<compile_context>
chip_gen: v6e
topology: v6e:2x2x1
jax: 0.10.0
libtpu: 0.0.40
codegen_flags: <defaults>
</compile_context>

<pallas_src>
import functools

import jax
import jax.numpy as jnp
from jax.experimental import pallas as pl
from jax.experimental.pallas import tpu as pltpu


C_STEM = 32       # stem conv output channels
C_FEAT = 2048     # Mixed_7c feature channels
K_RAW = 27        # 3*3 taps * 3 input channels
K_PAD = 32        # padded contraction dim


def _round_up(v, m):
    return ((v + m - 1) // m) * m


# ----------------------------------------------------------------------------
# Fused kernel: stem conv matmul (preprocess folded into weights) + ReLU
#   -> chunked 1x1 projection to 2048 ch + ReLU -> global-average-pool
#      accumulation into a (b_tile, 8, 2048) accumulator.
# Grid = (batch_blocks, hw_blocks); hw is the reduction axis.
# ----------------------------------------------------------------------------
def _fused_stem_proj_pool_kernel(patch_ref, w1_ref, b1_ref, w2_ref, b2_ref,
                                 corr_ref, o_ref, acc_ref, *,
                                 hw, b_tile, tile_hw, chunk):
    t = pl.program_id(1)

    @pl.when(t == 0)
    def _():
        acc_ref[...] = jnp.zeros_like(acc_ref)

    rows = b_tile * tile_hw
    cfeat = w2_ref.shape[1]

    # stem conv (im2col matmul): bf16 MXU inputs, f32 accumulate, f32 epilogue
    patches = patch_ref[...].reshape(rows, patch_ref.shape[2])
    stem = jnp.dot(patches, w1_ref[...], preferred_element_type=jnp.float32)
    stem = jnp.maximum(stem + b1_ref[...], 0.0).astype(jnp.bfloat16)

    # chunked 1x1 projection into the 2048-ch feature space + ReLU + partial
    # row-sum; the full (rows, 2048) f32 activation is never materialized.
    for c0 in range(0, cfeat, chunk):
        w2c = w2_ref[:, c0:c0 + chunk]
        b2c = b2_ref[:, c0:c0 + chunk]
        y = jnp.dot(stem, w2c, preferred_element_type=jnp.float32)
        y = jnp.maximum(y + b2c, 0.0)
        for b in range(b_tile):
            yb = y[b * tile_hw:(b + 1) * tile_hw]
            # (tile_hw, chunk) -> (tile_hw//8, 8, chunk): pure relabeling; the
            # axis-0 sum is full-vreg VPU adds (no cross-sublane work here).
            acc_ref[b, :, c0:c0 + chunk] += (
                yb.reshape(tile_hw // 8, 8, chunk).sum(axis=0))

    @pl.when(t == pl.num_programs(1) - 1)
    def _():
        # One cross-sublane collapse per batch block, then subtract the
        # precomputed contribution of the zero-padded spatial rows and scale.
        total = jnp.sum(acc_ref[...], axis=1, keepdims=True)   # (b_tile,1,cfeat)
        o_ref[...] = (total - corr_ref[...]) * (1.0 / hw)


def fused_stem_proj_pool(patches, w1, b1, w2, b2, corr, *,
                         hw, tile_hw, b_tile, chunk=256):
    n, hwp, kpad = patches.shape
    cfeat = w2.shape[1]
    assert n % b_tile == 0 and hwp % tile_hw == 0 and cfeat % chunk == 0

    kernel = functools.partial(_fused_stem_proj_pool_kernel, hw=hw,
                               b_tile=b_tile, tile_hw=tile_hw, chunk=chunk)
    out = pl.pallas_call(
        kernel,
        out_shape=jax.ShapeDtypeStruct((n, 1, cfeat), jnp.float32),
        grid_spec=pltpu.PrefetchScalarGridSpec(
            num_scalar_prefetch=0,
            grid=(n // b_tile, hwp // tile_hw),
            in_specs=[
                pl.BlockSpec((b_tile, tile_hw, kpad), lambda b, t: (b, t, 0)),
                pl.BlockSpec((kpad, C_STEM), lambda b, t: (0, 0)),
                pl.BlockSpec((1, C_STEM), lambda b, t: (0, 0)),
                pl.BlockSpec((C_STEM, cfeat), lambda b, t: (0, 0)),
                pl.BlockSpec((1, cfeat), lambda b, t: (0, 0)),
                pl.BlockSpec((1, cfeat), lambda b, t: (0, 0)),
            ],
            out_specs=pl.BlockSpec((b_tile, 1, cfeat), lambda b, t: (b, 0, 0)),
            scratch_shapes=[pltpu.VMEM((b_tile, 8, cfeat), jnp.float32)],
        ),
        compiler_params=pltpu.CompilerParams(
            dimension_semantics=("parallel", "arbitrary"),
            # Real footprint: 2x patch block (<=128 KiB) + 2x w2 (256 KiB) +
            # biases/corr/out (~50 KiB) + accumulator (64 KiB * b_tile) +
            # chunked activations (<=1 MiB).  32 MiB leaves big headroom and
            # stays within v7x's 64 MiB physical VMEM.
            vmem_limit_bytes=32 * 1024 * 1024,
        ),
    )(patches, w1, b1, w2, b2, corr)
    return out.reshape(n, cfeat)


# ----------------------------------------------------------------------------
# Host-side glue: im2col for the 3x3 stride-2 conv stem.  The input is
# transposed to NHWC once, then taps are stacked directly in (tap, cin) order,
# avoiding the large transpose of the stacked patch tensor.
# ----------------------------------------------------------------------------
def im2col_nchw(x, kh, kw, stride):
    n, c, h, w = x.shape
    oh = (h - kh) // stride + 1
    ow = (w - kw) // stride + 1
    x_nhwc = jnp.transpose(x, (0, 2, 3, 1))
    taps = []
    for i in range(kh):
        for j in range(kw):
            taps.append(
                x_nhwc[:, i:i + stride * oh:stride, j:j + stride * ow:stride, :])
    p = jnp.stack(taps, axis=3)               # (N, OH, OW, KH*KW, C)
    return p.reshape(n, oh * ow, kh * kw * c), oh, ow


def _choose_b_tile(n, hw):
    # Pack several batch elements per grid step only when each image is tiny;
    # keep >=2 blocks on the "parallel" batch axis so both v7x TCs get work.
    if hw >= 1024:
        return 1
    for bt in (8, 4, 2):
        if n % bt == 0 and n // bt >= 2 and bt * _round_up(hw, 16) <= 2048:
            return bt
    return 1


def partial_inception_forward(x, params, *, max_tile_hw=1024, b_tile=None,
                              chunk=256):
    x = x.astype(jnp.float32)
    # grayscale -> 3 channels (torch.concat([x, x, x], dim=1))
    if x.shape[1] == 1:
        x = jnp.concatenate([x, x, x], axis=1)

    # The FID rescale x*2-1 and inception's transform_input affine are folded
    # into w1/b1 (make_params), so raw pixels go straight into the patches.
    patches, _, _ = im2col_nchw(x, 3, 3, 2)          # (N, HW, 27)
    n, hw, k = patches.shape

    tile_hw = min(max_tile_hw, _round_up(hw, 16))
    hwp = _round_up(hw, tile_hw)
    if b_tile is None:
        b_tile = _choose_b_tile(n, hw)
    if n % b_tile != 0:
        b_tile = 1

    patches = jnp.pad(patches, ((0, 0), (0, hwp - hw), (0, K_PAD - k)))
    patches = patches.astype(jnp.bfloat16)

    # Zero-padded spatial rows contribute the constant relu(relu(b1)@w2 + b2)
    # per row; precompute (hwp - hw) * that constant and subtract at finalize
    # instead of masking (tile_hw x 2048) activations on every grid step.
    stem_pad = jnp.maximum(params["b1"], 0.0).astype(jnp.bfloat16)
    y_pad = jnp.maximum(
        jnp.dot(stem_pad, params["w2"], preferred_element_type=jnp.float32)
        + params["b2"], 0.0)
    corr = (float(hwp - hw) * y_pad).astype(jnp.float32)        # (1, C_FEAT)

    return fused_stem_proj_pool(patches, params["w1"], params["b1"],
                                params["w2"], params["b2"], corr,
                                hw=hw, tile_hw=tile_hw, b_tile=b_tile,
                                chunk=chunk)


def make_params():
    # Deterministic synthetic weights (no checkpoint load).
    k_stem, k_proj = jax.random.split(jax.random.PRNGKey(42), 2)
    cin = 3

    # torchvision inception_v3 transform_input constants.
    means = jnp.array([0.485, 0.456, 0.406], dtype=jnp.float32)
    stds = jnp.array([0.229, 0.224, 0.225], dtype=jnp.float32)
    scale = stds / 0.5                    # per-channel scale applied to [-1,1] input
    shift = (means - 0.5) / 0.5           # per-channel shift

    # Conv stem weight in PyTorch layout (Cout, Cin, KH, KW) -> matmul layout
    # (KH*KW*Cin, Cout) matching the im2col (tap-major, cin-minor) flattening.
    w_stem_t = 0.1 * jax.random.normal(k_stem, (C_STEM, cin, 3, 3), jnp.float32)
    w_stem = w_stem_t.transpose(2, 3, 1, 0).reshape(3 * 3 * cin, C_STEM)
    b_stem = jnp.zeros((1, C_STEM), jnp.float32)

    # Fold the elementwise preprocessing  x_pre = (x*2-1)*scale + shift
    #                                           = (2*scale)*x + (shift - scale)
    # into the (linear) stem conv:  w' = w * 2*scale_row,  b' = b + offset_row @ w
    scale_rows = jnp.tile(scale, 3 * 3)          # cin varies fastest, matches im2col
    offset_rows = jnp.tile(shift - scale, 3 * 3)
    w1 = w_stem * (2.0 * scale_rows)[:, None]
    b1 = (b_stem + offset_rows @ w_stem).astype(jnp.float32)      # (1, 32)

    # pad contraction dim 27 -> 32 with zero rows; matmul operands in bf16
    w1 = jnp.pad(w1, ((0, K_PAD - 3 * 3 * cin), (0, 0))).astype(jnp.bfloat16)

    w2_f32 = 0.05 * jax.random.normal(k_proj, (C_STEM, C_FEAT), jnp.float32)
    w2 = w2_f32.astype(jnp.bfloat16)
    b2 = jnp.zeros((1, C_FEAT), jnp.float32)

    params = dict(w1=w1, b1=b1, w2=w2, b2=b2)
    raw = dict(w_stem=w_stem, b_stem=b_stem, w2=w2_f32, b2=b2,
               scale=scale, shift=shift)
    return params, raw


# Pure-JAX reference mirroring the kernel's numerics (folded weights, bf16
# matmul inputs, f32 accumulation).
def reference_forward_bf16(x, params):
    x = x.astype(jnp.float32)
    if x.shape[1] == 1:
        x = jnp.concatenate([x, x, x], axis=1)
    p, _, _ = im2col_nchw(x, 3, 3, 2)
    p = jnp.pad(p, ((0, 0), (0, 0), (0, K_PAD - p.shape[-1])))
    p = p.astype(jnp.bfloat16)
    stem = jnp.maximum(
        jnp.einsum("nhk,kc->nhc", p, params["w1"],
                   preferred_element_type=jnp.float32) + params["b1"], 0.0)
    stem = stem.astype(jnp.bfloat16)
    y = jnp.maximum(
        jnp.einsum("nhc,cf->nhf", stem, params["w2"],
                   preferred_element_type=jnp.float32) + params["b2"], 0.0)
    return jnp.mean(y, axis=1)


# Independent f32 reference with UNFOLDED stem weights and explicit
# preprocessing (x*2-1 + transform_input affine) — verifies the fold math.
def reference_forward_unfolded(x, raw):
    x = x.astype(jnp.float32)
    if x.shape[1] == 1:
        x = jnp.concatenate([x, x, x], axis=1)
    x = x * 2.0 - 1.0
    x = x * raw["scale"].reshape(1, 3, 1, 1) + raw["shift"].reshape(1, 3, 1, 1)
    p, _, _ = im2col_nchw(x, 3, 3, 2)                  # (N, HW, 27)
    stem = jnp.maximum(
        jnp.einsum("nhk,kc->nhc", p, raw["w_stem"]) + raw["b_stem"], 0.0)
    y = jnp.maximum(
        jnp.einsum("nhc,cf->nhf", stem, raw["w2"]) + raw["b2"], 0.0)
    return jnp.mean(y, axis=1)


if __name__ == "__main__":
    params, raw = make_params()

    # Small NCHW input consistent with the module's forward (batch=2, 3ch, 16x16).
    x = jax.random.uniform(jax.random.PRNGKey(0), (2, 3, 16, 16),
                           dtype=jnp.float32)
    activations = jax.block_until_ready(partial_inception_forward(x, params))
    assert activations.shape == (2, C_FEAT), activations.shape
    assert activations.dtype == jnp.float32

    ref_bf16 = reference_forward_bf16(x, params)
    err = float(jnp.max(jnp.abs(activations - ref_bf16)))
    assert jnp.allclose(activations, ref_bf16, rtol=1e-2, atol=1e-3), err

    ref_unf = reference_forward_unfolded(x, raw)
    err = float(jnp.max(jnp.abs(activations - ref_unf)))
    assert jnp.allclose(activations, ref_unf, rtol=5e-2, atol=5e-3), err

    # Grayscale path (x.shape[1] == 1): channel replication checked numerically.
    x_gray = jax.random.uniform(jax.random.PRNGKey(1), (2, 1, 16, 16),
                                dtype=jnp.float32)
    act_gray = jax.block_until_ready(partial_inception_forward(x_gray, params))
    assert act_gray.shape == (2, C_FEAT)
    ref_gray = reference_forward_bf16(x_gray, params)
    err = float(jnp.max(jnp.abs(act_gray - ref_gray)))
    assert jnp.allclose(act_gray, ref_gray, rtol=1e-2, atol=1e-3), err
    ref_gray_unf = reference_forward_unfolded(x_gray, raw)
    err = float(jnp.max(jnp.abs(act_gray - ref_gray_unf)))
    assert jnp.allclose(act_gray, ref_gray_unf, rtol=5e-2, atol=5e-3), err

    # Batch-packed path (b_tile=2 images flattened per grid step).
    x4 = jax.random.uniform(jax.random.PRNGKey(2), (4, 3, 16, 16),
                            dtype=jnp.float32)
    act4 = jax.block_until_ready(
        partial_inception_forward(x4, params, b_tile=2))
    ref4 = reference_forward_bf16(x4, params)
    err = float(jnp.max(jnp.abs(act4 - ref4)))
    assert act4.shape == (4, C_FEAT)
    assert jnp.allclose(act4, ref4, rtol=1e-2, atol=1e-3), err

    print("KERNEL_OK")
</pallas_src>

<mosaic_0001>
module attributes {stable_mosaic.version = 11 : i64} {
  func.func @_fused_stem_proj_pool_kernel(%arg0: i32, %arg1: i32, %arg2: memref<1x64x32xbf16, #tpu.memory_space<vmem>>, %arg3: memref<32x32xbf16, #tpu.memory_space<vmem>>, %arg4: memref<1x32xf32, #tpu.memory_space<vmem>>, %arg5: memref<32x2048xbf16, #tpu.memory_space<vmem>>, %arg6: memref<1x2048xf32, #tpu.memory_space<vmem>>, %arg7: memref<1x2048xf32, #tpu.memory_space<vmem>>, %arg8: memref<1x1x2048xf32, #tpu.memory_space<vmem>>, %arg9: memref<1x8x2048xf32, #tpu.memory_space<vmem>>) attributes {dimension_semantics = [#tpu.dimension_semantics<parallel>, #tpu.dimension_semantics<arbitrary>], iteration_bounds = array<i64: 2, 1>, scalar_prefetch = 0 : i64, scratch_operands = 1 : i64, tpu.core_type = #tpu.core_type<tc>, window_params = [{transform_indices = @transform_0, window_bounds = array<i64: 1, 64, 32>}, {pipeline_mode = #tpu.pipeline_mode<synchronous>, transform_indices = @transform_1, window_bounds = array<i64: 32, 32>}, {pipeline_mode = #tpu.pipeline_mode<synchronous>, transform_indices = @transform_2, window_bounds = array<i64: 1, 32>}, {pipeline_mode = #tpu.pipeline_mode<synchronous>, transform_indices = @transform_3, window_bounds = array<i64: 32, 2048>}, {pipeline_mode = #tpu.pipeline_mode<synchronous>, transform_indices = @transform_4, window_bounds = array<i64: 1, 2048>}, {pipeline_mode = #tpu.pipeline_mode<synchronous>, transform_indices = @transform_5, window_bounds = array<i64: 1, 2048>}, {transform_indices = @transform_6, window_bounds = array<i64: 1, 1, 2048>}]} {
    %c0_i32 = arith.constant 0 : i32
    %0 = arith.cmpi eq, %arg1, %c0_i32 : i32
    %1 = arith.extui %0 : i1 to i32
    %c0_i32_0 = arith.constant 0 : i32
    %2 = arith.cmpi ne, %1, %c0_i32_0 : i32
    scf.if %2 {
      %cst_107 = arith.constant 0.000000e+00 : f32
      %136 = vector.broadcast %cst_107 : f32 to vector<1x8x2048xf32>
      %c0_108 = arith.constant 0 : index
      %c0_109 = arith.constant 0 : index
      %c0_110 = arith.constant 0 : index
      %137 = vector.load %arg9[%c0_108, %c0_109, %c0_110] : memref<1x8x2048xf32, #tpu.memory_space<vmem>>, vector<1x8x2048xf32>
      tpu.vector_store %arg9[%c0_108, %c0_109, %c0_110], %136 {strides = array<i32>} : memref<1x8x2048xf32, #tpu.memory_space<vmem>>, vector<1x8x2048xf32>,
    } else {
    }
    %c0 = arith.constant 0 : index
    %c0_1 = arith.constant 0 : index
    %c0_2 = arith.constant 0 : index
    %3 = vector.load %arg2[%c0, %c0_1, %c0_2] : memref<1x64x32xbf16, #tpu.memory_space<vmem>>, vector<1x64x32xbf16>
    %4 = vector.shape_cast %3 : vector<1x64x32xbf16> to vector<64x32xbf16>
    %c0_3 = arith.constant 0 : index
    %c0_4 = arith.constant 0 : index
    %5 = vector.load %arg3[%c0_3, %c0_4] : memref<32x32xbf16, #tpu.memory_space<vmem>>, vector<32x32xbf16>
    %cst = arith.constant dense<0.000000e+00> : vector<64x32xf32>
    %6 = tpu.matmul %4, %5, %cst {dimension_numbers = #tpu.dot_dimension_numbers<[1], [0], [0], [1], [0, 0, 1, 1], [], []>} : vector<64x32xbf16>, vector<32x32xbf16>, vector<64x32xf32> -> vector<64x32xf32>
    %c0_5 = arith.constant 0 : index
    %c0_6 = arith.constant 0 : index
    %7 = vector.load %arg4[%c0_5, %c0_6] : memref<1x32xf32, #tpu.memory_space<vmem>>, vector<1x32xf32>
    %8 = vector.broadcast %7 : vector<1x32xf32> to vector<64x32xf32>
    %9 = arith.addf %6, %8 : vector<64x32xf32>
    %cst_7 = arith.constant 0.000000e+00 : f32
    %10 = vector.broadcast %cst_7 : f32 to vector<64x32xf32>
    %11 = arith.maximumf %9, %10 : vector<64x32xf32>
    %12 = arith.truncf %11 : vector<64x32xf32> to vector<64x32xbf16>
    %c0_8 = arith.constant 0 : index
    %c0_9 = arith.constant 0 : index
    %13 = vector.load %arg5[%c0_8, %c0_9] : memref<32x2048xbf16, #tpu.memory_space<vmem>>, vector<32x256xbf16>
    %c0_10 = arith.constant 0 : index
    %c0_11 = arith.constant 0 : index
    %14 = vector.load %arg6[%c0_10, %c0_11] : memref<1x2048xf32, #tpu.memory_space<vmem>>, vector<1x256xf32>
    %cst_12 = arith.constant dense<0.000000e+00> : vector<64x256xf32>
    %15 = tpu.matmul %12, %13, %cst_12 {dimension_numbers = #tpu.dot_dimension_numbers<[1], [0], [0], [1], [0, 0, 1, 1], [], []>} : vector<64x32xbf16>, vector<32x256xbf16>, vector<64x256xf32> -> vector<64x256xf32>
    %16 = vector.broadcast %14 : vector<1x256xf32> to vector<64x256xf32>
    %17 = arith.addf %15, %16 : vector<64x256xf32>
    %cst_13 = arith.constant 0.000000e+00 : f32
    %18 = vector.broadcast %cst_13 : f32 to vector<64x256xf32>
    %19 = arith.maximumf %17, %18 : vector<64x256xf32>
    %c0_14 = arith.constant 0 : index
    %c0_15 = arith.constant 0 : index
    %c0_16 = arith.constant 0 : index
    %20 = vector.load %arg9[%c0_14, %c0_15, %c0_16] : memref<1x8x2048xf32, #tpu.memory_space<vmem>>, vector<1x8x256xf32>
    %21 = vector.shape_cast %20 : vector<1x8x256xf32> to vector<8x256xf32>
    %22 = vector.shape_cast %19 : vector<64x256xf32> to vector<8x8x256xf32>
    %cst_17 = arith.constant dense<0.000000e+00> : vector<8x256xf32>
    %23 = vector.multi_reduction <add>, %22, %cst_17 [0] : vector<8x8x256xf32> to vector<8x256xf32>
    %24 = arith.addf %21, %23 : vector<8x256xf32>
    %c0_18 = arith.constant 0 : index
    %c0_19 = arith.constant 0 : index
    %c0_20 = arith.constant 0 : index
    %25 = vector.load %arg9[%c0_18, %c0_19, %c0_20] : memref<1x8x2048xf32, #tpu.memory_space<vmem>>, vector<1x8x256xf32>
    %26 = vector.shape_cast %25 : vector<1x8x256xf32> to vector<8x256xf32>
    %27 = vector.shape_cast %24 : vector<8x256xf32> to vector<1x8x256xf32>
    tpu.vector_store %arg9[%c0_18, %c0_19, %c0_20], %27 {strides = array<i32>} : memref<1x8x2048xf32, #tpu.memory_space<vmem>>, vector<1x8x256xf32>,
    %c0_21 = arith.constant 0 : index
    %c256 = arith.constant 256 : index
    %28 = vector.load %arg5[%c0_21, %c256] : memref<32x2048xbf16, #tpu.memory_space<vmem>>, vector<32x256xbf16>
    %c0_22 = arith.constant 0 : index
    %c256_23 = arith.constant 256 : index
    %29 = vector.load %arg6[%c0_22, %c256_23] : memref<1x2048xf32, #tpu.memory_space<vmem>>, vector<1x256xf32>
    %cst_24 = arith.constant dense<0.000000e+00> : vector<64x256xf32>
    %30 = tpu.matmul %12, %28, %cst_24 {dimension_numbers = #tpu.dot_dimension_numbers<[1], [0], [0], [1], [0, 0, 1, 1], [], []>} : vector<64x32xbf16>, vector<32x256xbf16>, vector<64x256xf32> -> vector<64x256xf32>
    %31 = vector.broadcast %29 : vector<1x256xf32> to vector<64x256xf32>
    %32 = arith.addf %30, %31 : vector<64x256xf32>
    %cst_25 = arith.constant 0.000000e+00 : f32
    %33 = vector.broadcast %cst_25 : f32 to vector<64x256xf32>
    %34 = arith.maximumf %32, %33 : vector<64x256xf32>
    %c0_26 = arith.constant 0 : index
    %c0_27 = arith.constant 0 : index
    %c256_28 = arith.constant 256 : index
    %35 = vector.load %arg9[%c0_26, %c0_27, %c256_28] : memref<1x8x2048xf32, #tpu.memory_space<vmem>>, vector<1x8x256xf32>
    %36 = vector.shape_cast %35 : vector<1x8x256xf32> to vector<8x256xf32>
    %37 = vector.shape_cast %34 : vector<64x256xf32> to vector<8x8x256xf32>
    %cst_29 = arith.constant dense<0.000000e+00> : vector<8x256xf32>
    %38 = vector.multi_reduction <add>, %37, %cst_29 [0] : vector<8x8x256xf32> to vector<8x256xf32>
    %39 = arith.addf %36, %38 : vector<8x256xf32>
    %c0_30 = arith.constant 0 : index
    %c0_31 = arith.constant 0 : index
    %c256_32 = arith.constant 256 : index
    %40 = vector.load %arg9[%c0_30, %c0_31, %c256_32] : memref<1x8x2048xf32, #tpu.memory_space<vmem>>, vector<1x8x256xf32>
    %41 = vector.shape_cast %40 : vector<1x8x256xf32> to vector<8x256xf32>
    %42 = vector.shape_cast %39 : vector<8x256xf32> to vector<1x8x256xf32>
    tpu.vector_store %arg9[%c0_30, %c0_31, %c256_32], %42 {strides = array<i32>} : memref<1x8x2048xf32, #tpu.memory_space<vmem>>, vector<1x8x256xf32>,
    %c0_33 = arith.constant 0 : index
    %c512 = arith.constant 512 : index
    %43 = vector.load %arg5[%c0_33, %c512] : memref<32x2048xbf16, #tpu.memory_space<vmem>>, vector<32x256xbf16>
    %c0_34 = arith.constant 0 : index
    %c512_35 = arith.constant 512 : index
    %44 = vector.load %arg6[%c0_34, %c512_35] : memref<1x2048xf32, #tpu.memory_space<vmem>>, vector<1x256xf32>
    %cst_36 = arith.constant dense<0.000000e+00> : vector<64x256xf32>
    %45 = tpu.matmul %12, %43, %cst_36 {dimension_numbers = #tpu.dot_dimension_numbers<[1], [0], [0], [1], [0, 0, 1, 1], [], []>} : vector<64x32xbf16>, vector<32x256xbf16>, vector<64x256xf32> -> vector<64x256xf32>
    %46 = vector.broadcast %44 : vector<1x256xf32> to vector<64x256xf32>
    %47 = arith.addf %45, %46 : vector<64x256xf32>
    %cst_37 = arith.constant 0.000000e+00 : f32
    %48 = vector.broadcast %cst_37 : f32 to vector<64x256xf32>
    %49 = arith.maximumf %47, %48 : vector<64x256xf32>
    %c0_38 = arith.constant 0 : index
    %c0_39 = arith.constant 0 : index
    %c512_40 = arith.constant 512 : index
    %50 = vector.load %arg9[%c0_38, %c0_39, %c512_40] : memref<1x8x2048xf32, #tpu.memory_space<vmem>>, vector<1x8x256xf32>
    %51 = vector.shape_cast %50 : vector<1x8x256xf32> to vector<8x256xf32>
    %52 = vector.shape_cast %49 : vector<64x256xf32> to vector<8x8x256xf32>
    %cst_41 = arith.constant dense<0.000000e+00> : vector<8x256xf32>
    %53 = vector.multi_reduction <add>, %52, %cst_41 [0] : vector<8x8x256xf32> to vector<8x256xf32>
    %54 = arith.addf %51, %53 : vector<8x256xf32>
    %c0_42 = arith.constant 0 : index
    %c0_43 = arith.constant 0 : index
    %c512_44 = arith.constant 512 : index
    %55 = vector.load %arg9[%c0_42, %c0_43, %c512_44] : memref<1x8x2048xf32, #tpu.memory_space<vmem>>, vector<1x8x256xf32>
    %56 = vector.shape_cast %55 : vector<1x8x256xf32> to vector<8x256xf32>
    %57 = vector.shape_cast %54 : vector<8x256xf32> to vector<1x8x256xf32>
    tpu.vector_store %arg9[%c0_42, %c0_43, %c512_44], %57 {strides = array<i32>} : memref<1x8x2048xf32, #tpu.memory_space<vmem>>, vector<1x8x256xf32>,
    %c0_45 = arith.constant 0 : index
    %c768 = arith.constant 768 : index
    %58 = vector.load %arg5[%c0_45, %c768] : memref<32x2048xbf16, #tpu.memory_space<vmem>>, vector<32x256xbf16>
    %c0_46 = arith.constant 0 : index
    %c768_47 = arith.constant 768 : index
    %59 = vector.load %arg6[%c0_46, %c768_47] : memref<1x2048xf32, #tpu.memory_space<vmem>>, vector<1x256xf32>
    %cst_48 = arith.constant dense<0.000000e+00> : vector<64x256xf32>
    %60 = tpu.matmul %12, %58, %cst_48 {dimension_numbers = #tpu.dot_dimension_numbers<[1], [0], [0], [1], [0, 0, 1, 1], [], []>} : vector<64x32xbf16>, vector<32x256xbf16>, vector<64x256xf32> -> vector<64x256xf32>
    %61 = vector.broadcast %59 : vector<1x256xf32> to vector<64x256xf32>
    %62 = arith.addf %60, %61 : vector<64x256xf32>
    %cst_49 = arith.constant 0.000000e+00 : f32
    %63 = vector.broadcast %cst_49 : f32 to vector<64x256xf32>
    %64 = arith.maximumf %62, %63 : vector<64x256xf32>
    %c0_50 = arith.constant 0 : index
    %c0_51 = arith.constant 0 : index
    %c768_52 = arith.constant 768 : index
    %65 = vector.load %arg9[%c0_50, %c0_51, %c768_52] : memref<1x8x2048xf32, #tpu.memory_space<vmem>>, vector<1x8x256xf32>
    %66 = vector.shape_cast %65 : vector<1x8x256xf32> to vector<8x256xf32>
    %67 = vector.shape_cast %64 : vector<64x256xf32> to vector<8x8x256xf32>
    %cst_53 = arith.constant dense<0.000000e+00> : vector<8x256xf32>
    %68 = vector.multi_reduction <add>, %67, %cst_53 [0] : vector<8x8x256xf32> to vector<8x256xf32>
    %69 = arith.addf %66, %68 : vector<8x256xf32>
    %c0_54 = arith.constant 0 : index
    %c0_55 = arith.constant 0 : index
    %c768_56 = arith.constant 768 : index
    %70 = vector.load %arg9[%c0_54, %c0_55, %c768_56] : memref<1x8x2048xf32, #tpu.memory_space<vmem>>, vector<1x8x256xf32>
    %71 = vector.shape_cast %70 : vector<1x8x256xf32> to vector<8x256xf32>
    %72 = vector.shape_cast %69 : vector<8x256xf32> to vector<1x8x256xf32>
    tpu.vector_store %arg9[%c0_54, %c0_55, %c768_56], %72 {strides = array<i32>} : memref<1x8x2048xf32, #tpu.memory_space<vmem>>, vector<1x8x256xf32>,
    %c0_57 = arith.constant 0 : index
    %c1024 = arith.constant 1024 : index
    %73 = vector.load %arg5[%c0_57, %c1024] : memref<32x2048xbf16, #tpu.memory_space<vmem>>, vector<32x256xbf16>
    %c0_58 = arith.constant 0 : index
    %c1024_59 = arith.constant 1024 : index
    %74 = vector.load %arg6[%c0_58, %c1024_59] : memref<1x2048xf32, #tpu.memory_space<vmem>>, vector<1x256xf32>
    %cst_60 = arith.constant dense<0.000000e+00> : vector<64x256xf32>
    %75 = tpu.matmul %12, %73, %cst_60 {dimension_numbers = #tpu.dot_dimension_numbers<[1], [0], [0], [1], [0, 0, 1, 1], [], []>} : vector<64x32xbf16>, vector<32x256xbf16>, vector<64x256xf32> -> vector<64x256xf32>
    %76 = vector.broadcast %74 : vector<1x256xf32> to vector<64x256xf32>
    %77 = arith.addf %75, %76 : vector<64x256xf32>
    %cst_61 = arith.constant 0.000000e+00 : f32
    %78 = vector.broadcast %cst_61 : f32 to vector<64x256xf32>
    %79 = arith.maximumf %77, %78 : vector<64x256xf32>
    %c0_62 = arith.constant 0 : index
    %c0_63 = arith.constant 0 : index
    %c1024_64 = arith.constant 1024 : index
    %80 = vector.load %arg9[%c0_62, %c0_63, %c1024_64] : memref<1x8x2048xf32, #tpu.memory_space<vmem>>, vector<1x8x256xf32>
    %81 = vector.shape_cast %80 : vector<1x8x256xf32> to vector<8x256xf32>
    %82 = vector.shape_cast %79 : vector<64x256xf32> to vector<8x8x256xf32>
    %cst_65 = arith.constant dense<0.000000e+00> : vector<8x256xf32>
    %83 = vector.multi_reduction <add>, %82, %cst_65 [0] : vector<8x8x256xf32> to vector<8x256xf32>
    %84 = arith.addf %81, %83 : vector<8x256xf32>
    %c0_66 = arith.constant 0 : index
    %c0_67 = arith.constant 0 : index
    %c1024_68 = arith.constant 1024 : index
    %85 = vector.load %arg9[%c0_66, %c0_67, %c1024_68] : memref<1x8x2048xf32, #tpu.memory_space<vmem>>, vector<1x8x256xf32>
    %86 = vector.shape_cast %85 : vector<1x8x256xf32> to vector<8x256xf32>
    %87 = vector.shape_cast %84 : vector<8x256xf32> to vector<1x8x256xf32>
    tpu.vector_store %arg9[%c0_66, %c0_67, %c1024_68], %87 {strides = array<i32>} : memref<1x8x2048xf32, #tpu.memory_space<vmem>>, vector<1x8x256xf32>,
    %c0_69 = arith.constant 0 : index
    %c1280 = arith.constant 1280 : index
    %88 = vector.load %arg5[%c0_69, %c1280] : memref<32x2048xbf16, #tpu.memory_space<vmem>>, vector<32x256xbf16>
    %c0_70 = arith.constant 0 : index
    %c1280_71 = arith.constant 1280 : index
    %89 = vector.load %arg6[%c0_70, %c1280_71] : memref<1x2048xf32, #tpu.memory_space<vmem>>, vector<1x256xf32>
    %cst_72 = arith.constant dense<0.000000e+00> : vector<64x256xf32>
    %90 = tpu.matmul %12, %88, %cst_72 {dimension_numbers = #tpu.dot_dimension_numbers<[1], [0], [0], [1], [0, 0, 1, 1], [], []>} : vector<64x32xbf16>, vector<32x256xbf16>, vector<64x256xf32> -> vector<64x256xf32>
    %91 = vector.broadcast %89 : vector<1x256xf32> to vector<64x256xf32>
    %92 = arith.addf %90, %91 : vector<64x256xf32>
    %cst_73 = arith.constant 0.000000e+00 : f32
    %93 = vector.broadcast %cst_73 : f32 to vector<64x256xf32>
    %94 = arith.maximumf %92, %93 : vector<64x256xf32>
    %c0_74 = arith.constant 0 : index
    %c0_75 = arith.constant 0 : index
    %c1280_76 = arith.constant 1280 : index
    %95 = vector.load %arg9[%c0_74, %c0_75, %c1280_76] : memref<1x8x2048xf32, #tpu.memory_space<vmem>>, vector<1x8x256xf32>
    %96 = vector.shape_cast %95 : vector<1x8x256xf32> to vector<8x256xf32>
    %97 = vector.shape_cast %94 : vector<64x256xf32> to vector<8x8x256xf32>
    %cst_77 = arith.constant dense<0.000000e+00> : vector<8x256xf32>
    %98 = vector.multi_reduction <add>, %97, %cst_77 [0] : vector<8x8x256xf32> to vector<8x256xf32>
    %99 = arith.addf %96, %98 : vector<8x256xf32>
    %c0_78 = arith.constant 0 : index
    %c0_79 = arith.constant 0 : index
    %c1280_80 = arith.constant 1280 : index
    %100 = vector.load %arg9[%c0_78, %c0_79, %c1280_80] : memref<1x8x2048xf32, #tpu.memory_space<vmem>>, vector<1x8x256xf32>
    %101 = vector.shape_cast %100 : vector<1x8x256xf32> to vector<8x256xf32>
    %102 = vector.shape_cast %99 : vector<8x256xf32> to vector<1x8x256xf32>
    tpu.vector_store %arg9[%c0_78, %c0_79, %c1280_80], %102 {strides = array<i32>} : memref<1x8x2048xf32, #tpu.memory_space<vmem>>, vector<1x8x256xf32>,
    %c0_81 = arith.constant 0 : index
    %c1536 = arith.constant 1536 : index
    %103 = vector.load %arg5[%c0_81, %c1536] : memref<32x2048xbf16, #tpu.memory_space<vmem>>, vector<32x256xbf16>
    %c0_82 = arith.constant 0 : index
    %c1536_83 = arith.constant 1536 : index
    %104 = vector.load %arg6[%c0_82, %c1536_83] : memref<1x2048xf32, #tpu.memory_space<vmem>>, vector<1x256xf32>
    %cst_84 = arith.constant dense<0.000000e+00> : vector<64x256xf32>
    %105 = tpu.matmul %12, %103, %cst_84 {dimension_numbers = #tpu.dot_dimension_numbers<[1], [0], [0], [1], [0, 0, 1, 1], [], []>} : vector<64x32xbf16>, vector<32x256xbf16>, vector<64x256xf32> -> vector<64x256xf32>
    %106 = vector.broadcast %104 : vector<1x256xf32> to vector<64x256xf32>
    %107 = arith.addf %105, %106 : vector<64x256xf32>
    %cst_85 = arith.constant 0.000000e+00 : f32
    %108 = vector.broadcast %cst_85 : f32 to vector<64x256xf32>
    %109 = arith.maximumf %107, %108 : vector<64x256xf32>
    %c0_86 = arith.constant 0 : index
    %c0_87 = arith.constant 0 : index
    %c1536_88 = arith.constant 1536 : index
    %110 = vector.load %arg9[%c0_86, %c0_87, %c1536_88] : memref<1x8x2048xf32, #tpu.memory_space<vmem>>, vector<1x8x256xf32>
    %111 = vector.shape_cast %110 : vector<1x8x256xf32> to vector<8x256xf32>
    %112 = vector.shape_cast %109 : vector<64x256xf32> to vector<8x8x256xf32>
    %cst_89 = arith.constant dense<0.000000e+00> : vector<8x256xf32>
    %113 = vector.multi_reduction <add>, %112, %cst_89 [0] : vector<8x8x256xf32> to vector<8x256xf32>
    %114 = arith.addf %111, %113 : vector<8x256xf32>
    %c0_90 = arith.constant 0 : index
    %c0_91 = arith.constant 0 : index
    %c1536_92 = arith.constant 1536 : index
    %115 = vector.load %arg9[%c0_90, %c0_91, %c1536_92] : memref<1x8x2048xf32, #tpu.memory_space<vmem>>, vector<1x8x256xf32>
    %116 = vector.shape_cast %115 : vector<1x8x256xf32> to vector<8x256xf32>
    %117 = vector.shape_cast %114 : vector<8x256xf32> to vector<1x8x256xf32>
    tpu.vector_store %arg9[%c0_90, %c0_91, %c1536_92], %117 {strides = array<i32>} : memref<1x8x2048xf32, #tpu.memory_space<vmem>>, vector<1x8x256xf32>,
    %c0_93 = arith.constant 0 : index
    %c1792 = arith.constant 1792 : index
    %118 = vector.load %arg5[%c0_93, %c1792] : memref<32x2048xbf16, #tpu.memory_space<vmem>>, vector<32x256xbf16>
    %c0_94 = arith.constant 0 : index
    %c1792_95 = arith.constant 1792 : index
    %119 = vector.load %arg6[%c0_94, %c1792_95] : memref<1x2048xf32, #tpu.memory_space<vmem>>, vector<1x256xf32>
    %cst_96 = arith.constant dense<0.000000e+00> : vector<64x256xf32>
    %120 = tpu.matmul %12, %118, %cst_96 {dimension_numbers = #tpu.dot_dimension_numbers<[1], [0], [0], [1], [0, 0, 1, 1], [], []>} : vector<64x32xbf16>, vector<32x256xbf16>, vector<64x256xf32> -> vector<64x256xf32>
    %121 = vector.broadcast %119 : vector<1x256xf32> to vector<64x256xf32>
    %122 = arith.addf %120, %121 : vector<64x256xf32>
    %cst_97 = arith.constant 0.000000e+00 : f32
    %123 = vector.broadcast %cst_97 : f32 to vector<64x256xf32>
    %124 = arith.maximumf %122, %123 : vector<64x256xf32>
    %c0_98 = arith.constant 0 : index
    %c0_99 = arith.constant 0 : index
    %c1792_100 = arith.constant 1792 : index
    %125 = vector.load %arg9[%c0_98, %c0_99, %c1792_100] : memref<1x8x2048xf32, #tpu.memory_space<vmem>>, vector<1x8x256xf32>
    %126 = vector.shape_cast %125 : vector<1x8x256xf32> to vector<8x256xf32>
    %127 = vector.shape_cast %124 : vector<64x256xf32> to vector<8x8x256xf32>
    %cst_101 = arith.constant dense<0.000000e+00> : vector<8x256xf32>
    %128 = vector.multi_reduction <add>, %127, %cst_101 [0] : vector<8x8x256xf32> to vector<8x256xf32>
    %129 = arith.addf %126, %128 : vector<8x256xf32>
    %c0_102 = arith.constant 0 : index
    %c0_103 = arith.constant 0 : index
    %c1792_104 = arith.constant 1792 : index
    %130 = vector.load %arg9[%c0_102, %c0_103, %c1792_104] : memref<1x8x2048xf32, #tpu.memory_space<vmem>>, vector<1x8x256xf32>
    %131 = vector.shape_cast %130 : vector<1x8x256xf32> to vector<8x256xf32>
    %132 = vector.shape_cast %129 : vector<8x256xf32> to vector<1x8x256xf32>
    tpu.vector_store %arg9[%c0_102, %c0_103, %c1792_104], %132 {strides = array<i32>} : memref<1x8x2048xf32, #tpu.memory_space<vmem>>, vector<1x8x256xf32>,
    %c0_i32_105 = arith.constant 0 : i32
    %133 = arith.cmpi eq, %arg1, %c0_i32_105 : i32
    %134 = arith.extui %133 : i1 to i32
    %c0_i32_106 = arith.constant 0 : i32
    %135 = arith.cmpi ne, %134, %c0_i32_106 : i32
    scf.if %135 {
      %c0_107 = arith.constant 0 : index
      %c0_108 = arith.constant 0 : index
      %c0_109 = arith.constant 0 : index
      %136 = vector.load %arg9[%c0_107, %c0_108, %c0_109] : memref<1x8x2048xf32, #tpu.memory_space<vmem>>, vector<1x8x2048xf32>
      %cst_110 = arith.constant dense<0.000000e+00> : vector<1x2048xf32>
      %137 = vector.multi_reduction <add>, %136, %cst_110 [1] : vector<1x8x2048xf32> to vector<1x2048xf32>
      %138 = vector.shape_cast %137 : vector<1x2048xf32> to vector<1x1x2048xf32>
      %c0_111 = arith.constant 0 : index
      %c0_112 = arith.constant 0 : index
      %139 = vector.load %arg7[%c0_111, %c0_112] : memref<1x2048xf32, #tpu.memory_space<vmem>>, vector<1x2048xf32>
      %140 = vector.shape_cast %139 : vector<1x2048xf32> to vector<1x1x2048xf32>
      %141 = arith.subf %138, %140 : vector<1x1x2048xf32>
      %cst_113 = arith.constant 0.0204081628 : f32
      %142 = vector.broadcast %cst_113 : f32 to vector<1x1x2048xf32>
      %143 = arith.mulf %141, %142 : vector<1x1x2048xf32>
      %c0_114 = arith.constant 0 : index
      %c0_115 = arith.constant 0 : index
      %c0_116 = arith.constant 0 : index
      %144 = vector.load %arg8[%c0_114, %c0_115, %c0_116] : memref<1x1x2048xf32, #tpu.memory_space<vmem>>, vector<1x1x2048xf32>
      tpu.vector_store %arg8[%c0_114, %c0_115, %c0_116], %143 {strides = array<i32>} : memref<1x1x2048xf32, #tpu.memory_space<vmem>>, vector<1x1x2048xf32>,
    } else {
    }
    return
  }
  func.func @transform_0(%arg0: i32, %arg1: i32) -> (i32, i32, i32) {
    %c0_i32 = arith.constant 0 : i32
    %c0_i32_0 = arith.constant 0 : i32
    return %arg0, %arg1, %c0_i32 : i32, i32, i32
  }
  func.func @transform_1(%arg0: i32, %arg1: i32) -> (i32, i32) {
    %c0_i32 = arith.constant 0 : i32
    %c0_i32_0 = arith.constant 0 : i32
    %c0_i32_1 = arith.constant 0 : i32
    return %c0_i32, %c0_i32_0 : i32, i32
  }
  func.func @transform_2(%arg0: i32, %arg1: i32) -> (i32, i32) {
    %c0_i32 = arith.constant 0 : i32
    %c0_i32_0 = arith.constant 0 : i32
    %c0_i32_1 = arith.constant 0 : i32
    return %c0_i32, %c0_i32_0 : i32, i32
  }
  func.func @transform_3(%arg0: i32, %arg1: i32) -> (i32, i32) {
    %c0_i32 = arith.constant 0 : i32
    %c0_i32_0 = arith.constant 0 : i32
    %c0_i32_1 = arith.constant 0 : i32
    return %c0_i32, %c0_i32_0 : i32, i32
  }
  func.func @transform_4(%arg0: i32, %arg1: i32) -> (i32, i32) {
    %c0_i32 = arith.constant 0 : i32
    %c0_i32_0 = arith.constant 0 : i32
    %c0_i32_1 = arith.constant 0 : i32
    return %c0_i32, %c0_i32_0 : i32, i32
  }
  func.func @transform_5(%arg0: i32, %arg1: i32) -> (i32, i32) {
    %c0_i32 = arith.constant 0 : i32
    %c0_i32_0 = arith.constant 0 : i32
    %c0_i32_1 = arith.constant 0 : i32
    return %c0_i32, %c0_i32_0 : i32, i32
  }
  func.func @transform_6(%arg0: i32, %arg1: i32) -> (i32, i32, i32) {
    %c0_i32 = arith.constant 0 : i32
    %c0_i32_0 = arith.constant 0 : i32
    %c0_i32_1 = arith.constant 0 : i32
    return %arg0, %c0_i32, %c0_i32_0 : i32, i32, i32
  }
}

</mosaic_0001>

<llo_original>
// kernel: tpu_custom_call.1
$region0: #{tpu_custom_call.1}
  #allocation0 [shape = 'u32[]', space=smem, size = 0x4, offset = 0x4, fixed_abs, tag = 'smem constant byte address 0x4 - core index']
  #allocation1 [shape = 'u32[144,128]{1,0:T(1,128)}', space=vmem, size = 0x12000, scoped, tag = 'internal scratch']
  #allocation2 [shape = 'f32[1,8,2048]{2,1,0:T(8,128)}', space=vmem, size = 0x10000, scoped, tag = 'scratch operand']
  %s0 = inlined_call_operand.vmem [shape: bf16[2,64,32], index: 0, kind: input, shape index: {}]
  %s1 = inlined_call_operand.vmem [shape: bf16[32,32], index: 1, kind: input, shape index: {}]
  %s2 = inlined_call_operand.vmem [shape: f32[1,32], index: 2, kind: input, shape index: {}]
  %s3 = inlined_call_operand.hbm [shape: bf16[32,2048], index: 3, kind: input, shape index: {}]
  %s4 = inlined_call_operand.vmem [shape: f32[1,2048], index: 4, kind: input, shape index: {}]
  %s5 = inlined_call_operand.vmem [shape: f32[1,2048], index: 5, kind: input, shape index: {}]
  %s6 = inlined_call_operand.hbm [shape: f32[2,1,2048], index: 6, kind: output, shape index: {}]
  %s7 = sld [smem:[#allocation0]]
  $region69: #{tpu_custom_call.1} parent=0
    _
  %s9 = ssub.s32 1, %s7
  %s10 = scalar_select 0, %s9, %s7
  $region1: #{tpu_custom_call.1} parent=0
    #allocation3 [shape = 'u8[131072]{0}', space=vmem, size = 0x20000, scoped, tag = 'input window, operand 3, single buffered']
    #allocation4 [shape = 's32[2]{0}', space=sflag, size = 0x8, scoped, tag = 'scoped memory for tpu_custom_call.1']
    #allocation5 [shape = 's32[2]{0}', space=sflag, size = 0x8, scoped, tag = 'scoped memory for tpu_custom_call.1']
    #allocation6 [shape = 'u8[16384]{0}', space=vmem, size = 0x4000, scoped, tag = 'output window, operand 0']
    %11 = vsyncpa [#allocation4], 0
    %12 = vsyncpa [#allocation5], 0
    %s13 = scalar_lea.sflag [#allocation5], 1
    %14 = vsyncpa %s13, 0
    loop: start=0, step=1, limit=4
    $region2: #{tpu_custom_call.1} parent=1 // loop_pre_header
      _
    $region3: #{tpu_custom_call.1} parent=1 // loop_header
      %s16 = sphi 0, %s20
      %p17 = scmp.ge.s32.totalorder %s16, 4
      %s23 = sphi 0, %s35
      %s24 = sphi 0, %s31
      %s25 = sphi 0, %s23
      %s26 = sphi 0, %s24
      %s27 = sphi 0, %s25
      %s28 = sphi 0, %s26
      %s40 = sphi 0, %s42
      %s43 = sphi 0, %s40
      %s44 = sphi 0, %s43
      %s60 = sphi 0, %s44
      %s64 = sphi 0, %s64
      %s66 = sphi 0, %s64
      %s67 = sphi 0, %s66
      %s81 = sphi 0, %s67
      %s85 = sphi 0, %s85
      %s87 = sphi 0, %s85
      %s88 = sphi 0, %s87
      %s102 = sphi 0, %s88
      %s106 = sphi 0, %s106
      %s108 = sphi 0, %s106
      %s109 = sphi 0, %s108
      %s123 = sphi 0, %s109
      %s127 = sphi 0, %s127
      %s129 = sphi 0, %s127
      %s130 = sphi 0, %s129
      %s144 = sphi 0, %s130
      %s148 = sphi 0, %s148
      %s150 = sphi 0, %s148
      %s151 = sphi 0, %s150
      %s165 = sphi 0, %s151
      %s171 = sphi 0, %s173
      %s174 = sphi 0, %s171
      %s175 = sphi 0, %s174
      %s191 = sphi 0, %s175
    $region4: #{tpu_custom_call.1} parent=1 // loop_header_branch
      %19 = sbr.rel (%p17) target = $region8
    $region5: #{tpu_custom_call.1} parent=1 // loop_body
      %s21 = ssub.s32 %s16, 1
      %s22 = ssub.s32 %s16, 2
      %s29 = sadd.s32 1, %s24
      %p30 = scmp.ge.s32.totalorder %s29, 1
      %s31 = scalar_select %p30, 0, %s29
      %s32 = sadd.s32 1, %s23
      %s33 = scalar_select %p30, %s32, %s23
      %p34 = scmp.ge.s32.totalorder %s33, 2
      %s35 = scalar_select %p34, 0, %s33
      %s36 = ssub.s32 %s23, %s35
      %s37 = ssub.s32 %s24, %s31
      %s38 = sor.u32 %s36, %s37
      %p39 = scmp.eq.s32.totalorder %s38, 0
      %s41 = sadd.s32 %s40, 1
      %s42 = scalar_select %p39, %s40, %s41
      %p45 = pneg %p39
      %p46 = scmp.eq.s32.totalorder %s16, 1
      %p47 = por %p45, %p46
      %p48 = scmp.ne.s32.totalorder %s40, %s43
      %p49 = scmp.eq.s32.totalorder %s16, 0
      %p50 = por %p48, %p49
      %p51 = scmp.ne.s32.totalorder %s40, %s43
      %p52 = scmp.eq.s32.totalorder %s21, 1
      %p53 = por %p51, %p52
      %p54 = scmp.ne.s32.totalorder %s43, %s44
      %p55 = scmp.eq.s32.totalorder %s21, 0
      %p56 = por %p54, %p55
      %p57 = scmp.ne.s32.totalorder %s43, %s44
      %p58 = scmp.eq.s32.totalorder %s22, 1
      %p59 = por %p57, %p58
      %p61 = scmp.ne.s32.totalorder %s44, %s60
      %p62 = scmp.eq.s32.totalorder %s22, 0
      %p63 = por %p61, %p62
      %s65 = sadd.s32 %s64, 1
      %p68 = scmp.eq.s32.totalorder %s16, 1
      %p69 = scmp.ne.s32.totalorder %s64, %s66
      %p70 = scmp.eq.s32.totalorder %s16, 0
      %p71 = por %p69, %p70
      %p72 = scmp.ne.s32.totalorder %s64, %s66
      %p73 = scmp.eq.s32.totalorder %s21, 1
      %p74 = por %p72, %p73
      %p75 = scmp.ne.s32.totalorder %s66, %s67
      %p76 = scmp.eq.s32.totalorder %s21, 0
      %p77 = por %p75, %p76
      %p78 = scmp.ne.s32.totalorder %s66, %s67
      %p79 = scmp.eq.s32.totalorder %s22, 1
      %p80 = por %p78, %p79
      %p82 = scmp.ne.s32.totalorder %s67, %s81
      %p83 = scmp.eq.s32.totalorder %s22, 0
      %p84 = por %p82, %p83
      %s86 = sadd.s32 %s85, 1
      %p89 = scmp.eq.s32.totalorder %s16, 1
      %p90 = scmp.ne.s32.totalorder %s85, %s87
      %p91 = scmp.eq.s32.totalorder %s16, 0
      %p92 = por %p90, %p91
      %p93 = scmp.ne.s32.totalorder %s85, %s87
      %p94 = scmp.eq.s32.totalorder %s21, 1
      %p95 = por %p93, %p94
      %p96 = scmp.ne.s32.totalorder %s87, %s88
      %p97 = scmp.eq.s32.totalorder %s21, 0
      %p98 = por %p96, %p97
      %p99 = scmp.ne.s32.totalorder %s87, %s88
      %p100 = scmp.eq.s32.totalorder %s22, 1
      %p101 = por %p99, %p100
      %p103 = scmp.ne.s32.totalorder %s88, %s102
      %p104 = scmp.eq.s32.totalorder %s22, 0
      %p105 = por %p103, %p104
      %s107 = sadd.s32 %s106, 1
      %p110 = scmp.eq.s32.totalorder %s16, 1
      %p111 = scmp.ne.s32.totalorder %s106, %s108
      %p112 = scmp.eq.s32.totalorder %s16, 0
      %p113 = por %p111, %p112
      %p114 = scmp.ne.s32.totalorder %s106, %s108
      %p115 = scmp.eq.s32.totalorder %s21, 1
      %p116 = por %p114, %p115
      %p117 = scmp.ne.s32.totalorder %s108, %s109
      %p118 = scmp.eq.s32.totalorder %s21, 0
      %p119 = por %p117, %p118
      %p120 = scmp.ne.s32.totalorder %s108, %s109
      %p121 = scmp.eq.s32.totalorder %s22, 1
      %p122 = por %p120, %p121
      %p124 = scmp.ne.s32.totalorder %s109, %s123
      %p125 = scmp.eq.s32.totalorder %s22, 0
      %p126 = por %p124, %p125
      %s128 = sadd.s32 %s127, 1
      %p131 = scmp.eq.s32.totalorder %s16, 1
      %p132 = scmp.ne.s32.totalorder %s127, %s129
      %p133 = scmp.eq.s32.totalorder %s16, 0
      %p134 = por %p132, %p133
      %p135 = scmp.ne.s32.totalorder %s127, %s129
      %p136 = scmp.eq.s32.totalorder %s21, 1
      %p137 = por %p135, %p136
      %p138 = scmp.ne.s32.totalorder %s129, %s130
      %p139 = scmp.eq.s32.totalorder %s21, 0
      %p140 = por %p138, %p139
      %p141 = scmp.ne.s32.totalorder %s129, %s130
      %p142 = scmp.eq.s32.totalorder %s22, 1
      %p143 = por %p141, %p142
      %p145 = scmp.ne.s32.totalorder %s130, %s144
      %p146 = scmp.eq.s32.totalorder %s22, 0
      %p147 = por %p145, %p146
      %s149 = sadd.s32 %s148, 1
      %p152 = scmp.eq.s32.totalorder %s16, 1
      %p153 = scmp.ne.s32.totalorder %s148, %s150
      %p154 = scmp.eq.s32.totalorder %s16, 0
      %p155 = por %p153, %p154
      %p156 = scmp.ne.s32.totalorder %s148, %s150
      %p157 = scmp.eq.s32.totalorder %s21, 1
      %p158 = por %p156, %p157
      %p159 = scmp.ne.s32.totalorder %s150, %s151
      %p160 = scmp.eq.s32.totalorder %s21, 0
      %p161 = por %p159, %p160
      %p162 = scmp.ne.s32.totalorder %s150, %s151
      %p163 = scmp.eq.s32.totalorder %s22, 1
      %p164 = por %p162, %p163
      %p166 = scmp.ne.s32.totalorder %s151, %s165
      %p167 = scmp.eq.s32.totalorder %s22, 0
      %p168 = por %p166, %p167
      %s169 = ssub.s32 %s23, %s35
      %p170 = scmp.eq.s32.totalorder %s169, 0
      %s172 = sadd.s32 %s171, 1
      %s173 = scalar_select %p170, %s171, %s172
      %p176 = pneg %p170
      %p177 = scmp.eq.s32.totalorder %s16, 1
      %p178 = por %p176, %p177
      %p179 = scmp.ne.s32.totalorder %s171, %s174
      %p180 = scmp.eq.s32.totalorder %s16, 0
      %p181 = por %p179, %p180
      %p182 = scmp.ne.s32.totalorder %s171, %s174
      %p183 = scmp.eq.s32.totalorder %s21, 1
      %p184 = por %p182, %p183
      %p185 = scmp.ne.s32.totalorder %s174, %s175
      %p186 = scmp.eq.s32.totalorder %s21, 0
      %p187 = por %p185, %p186
      %p188 = scmp.ne.s32.totalorder %s174, %s175
      %p189 = scmp.eq.s32.totalorder %s22, 1
      %p190 = por %p188, %p189
      %p192 = scmp.ne.s32.totalorder %s175, %s191
      %p193 = scmp.eq.s32.totalorder %s22, 0
      %p194 = por %p192, %p193
      %p195 = scmp.le.s32.totalorder 1, %s16
      %p196 = scmp.lt.s32.totalorder %s16, 3
      %p197 = pnand %p195, %p196
      %p198 = pneg %p197
      // Predicated region
      $region9: #{tpu_custom_call.1} parent=5 // pred_check
        _
      $region10: #{tpu_custom_call.1} parent=5 // pred_check_branch
        %200 = sbr.rel (%p197) target = $region12
      $region11: #{tpu_custom_call.1} parent=5 // pred_region
        %s201 = ssub.s32 %s16, 1
        // Predicated region
        $region13: #{tpu_custom_call.1} parent=11 // pred_check
          %p202 = pneg %p77
        $region14: #{tpu_custom_call.1} parent=11 // pred_check_branch
          %204 = sbr.rel (%p202) target = $region16
        $region15: #{tpu_custom_call.1} parent=11 // pred_region
          _
        $region16: #{tpu_custom_call.1} parent=11 // pred_fallthru
          _
        // Predicated region
        $region17: #{tpu_custom_call.1} parent=11 // pred_check
          %p205 = pneg %p98
        $region18: #{tpu_custom_call.1} parent=11 // pred_check_branch
          %207 = sbr.rel (%p205) target = $region20
        $region19: #{tpu_custom_call.1} parent=11 // pred_region
          _
        $region20: #{tpu_custom_call.1} parent=11 // pred_fallthru
          _
        // Predicated region
        $region21: #{tpu_custom_call.1} parent=11 // pred_check
          %p208 = pneg %p119
        $region22: #{tpu_custom_call.1} parent=11 // pred_check_branch
          %210 = sbr.rel (%p208) target = $region24
        $region23: #{tpu_custom_call.1} parent=11 // pred_region
          %s212 = ssub.s32 4096, 4096
          %213 = vsyncadd [#allocation4], %s212
          %s214 = sshll.u32 [#allocation3], 4
          %s215 = int_to_ptr.vmem [resolvable:$true] %s214
          %220 = dma.hbm_to_vmem [thread:$0]  %s3, 4096, %s215, [#allocation4], 1024, 1024, 64
        $region24: #{tpu_custom_call.1} parent=11 // pred_fallthru
          _
        // Predicated region
        $region25: #{tpu_custom_call.1} parent=11 // pred_check
          %p221 = pneg %p140
        $region26: #{tpu_custom_call.1} parent=11 // pred_check_branch
          %223 = sbr.rel (%p221) target = $region28
        $region27: #{tpu_custom_call.1} parent=11 // pred_region
          _
        $region28: #{tpu_custom_call.1} parent=11 // pred_fallthru
          _
        // Predicated region
        $region29: #{tpu_custom_call.1} parent=11 // pred_check
          %p224 = pneg %p161
        $region30: #{tpu_custom_call.1} parent=11 // pred_check_branch
          %226 = sbr.rel (%p224) target = $region32
        $region31: #{tpu_custom_call.1} parent=11 // pred_region
          _
        $region32: #{tpu_custom_call.1} parent=11 // pred_fallthru
          _
      $region12: #{tpu_custom_call.1} parent=5 // pred_fallthru
        _
      %p227 = scmp.lt.s32.totalorder %s16, 2
      // Predicated region
      $region33: #{tpu_custom_call.1} parent=5 // pred_check
        %p228 = pneg %p227
      $region34: #{tpu_custom_call.1} parent=5 // pred_check_branch
        %230 = sbr.rel (%p228) target = $region36
      $region35: #{tpu_custom_call.1} parent=5 // pred_region
        // Predicated region
        $region37: #{tpu_custom_call.1} parent=35 // pred_check
          %p231 = pneg %p50
        $region38: #{tpu_custom_call.1} parent=35 // pred_check_branch
          %233 = sbr.rel (%p231) target = $region40
        $region39: #{tpu_custom_call.1} parent=35 // pred_region
          %s234 = smul.u32 8, %s24
          %p235 = scmp.lt.s32.totalorder %s23, 1
          %s236 = scalar_select %p235, %s23, 1
          %p237 = scmp.lt.s32.totalorder %s234, 7
          %s238 = scalar_select %p237, %s234, 7
          %s239 = smul.addr %s236, 8
          %s240 = sadd.s32 %s238, %s239
          %s241 = smul.addr %s240, 4
          %s242 = scalar_lea.vmem %s0, %s241
          %s243 = smul.u32 8, %s24
        $region40: #{tpu_custom_call.1} parent=35 // pred_fallthru
          _
      $region36: #{tpu_custom_call.1} parent=5 // pred_fallthru
        _
      %p244 = scmp.le.s32.totalorder 1, %s16
      %p245 = scmp.lt.s32.totalorder %s16, 3
      %p246 = pnand %p244, %p245
      %p247 = pneg %p246
      // Predicated region
      $region41: #{tpu_custom_call.1} parent=5 // pred_check
        _
      $region42: #{tpu_custom_call.1} parent=5 // pred_check_branch
        %249 = sbr.rel (%p246) target = $region44
      $region43: #{tpu_custom_call.1} parent=5 // pred_region
        %s250 = ssub.s32 %s16, 1
        // Predicated region
        $region45: #{tpu_custom_call.1} parent=43 // pred_check
          %p251 = pneg %p119
        $region46: #{tpu_custom_call.1} parent=43 // pred_check_branch
          %253 = sbr.rel (%p251) target = $region48
        $region47: #{tpu_custom_call.1} parent=43 // pred_region
          %254 = dma.done [#allocation4], 4096
        $region48: #{tpu_custom_call.1} parent=43 // pred_fallthru
          _
        %s255 = smul.u32 8, %s26
        %p256 = scmp.lt.s32.totalorder %s25, 1
        %s257 = scalar_select %p256, %s25, 1
        %p258 = scmp.lt.s32.totalorder %s255, 7
        %s259 = scalar_select %p258, %s255, 7
        %s260 = smul.addr %s257, 8
        %s261 = sadd.s32 %s259, %s260
        %s262 = smul.addr %s261, 4
        %s263 = scalar_lea.vmem %s0, %s262
        %p264 = pneg %p56
        %p265 = pneg %p53
        %p266 = pneg %p77
        %p267 = pneg %p74
        %p268 = pneg %p98
        %p269 = pneg %p95
        %p270 = pneg %p119
        %p271 = pneg %p116
        %p272 = pneg %p140
        %p273 = pneg %p137
        %p274 = pneg %p161
        %p275 = pneg %p158
        %p276 = pneg %p187
        %p277 = pneg %p184
        %s278 = sand.u32 %s174, 1
        %s279 = scalar_lea.sflag [#allocation5], %s278
        %s280 = sand.u32 %s174, 1
        %s281 = smul.addr %s280, 16
        %s282 = scalar_lea.vmem [#allocation6], %s281
        %s283 = smul.u32 8, %s26
        %p284 = scmp.lt.s32.totalorder %s25, 1
        %s285 = scalar_select %p284, %s25, 1
        %p286 = scmp.lt.s32.totalorder %s283, 7
        %s287 = scalar_select %p286, %s283, 7
        %s288 = smul.addr %s285, 8
        %s289 = sadd.s32 %s287, %s288
        %s290 = smul.addr %s289, 4
        %s291 = scalar_lea.vmem %s0, %s290
        %s292 = smul.u32 8, %s26
        %p294 = scmp.eq.s32.totalorder %s26, 0
        // Predicated region
        $region49: #{tpu_custom_call.1} parent=43 // pred_check
          %p295 = pneg %p294
        $region50: #{tpu_custom_call.1} parent=43 // pred_check_branch
          %297 = sbr.rel (%p295) target = $region52
        $region51: #{tpu_custom_call.1} parent=43 // pred_region
          %298 = vst [vmem:[#allocation2] sm:$0xff] 0.0
          %299 = vst [vmem:[#allocation2 + $0x8] sm:$0xff] 0.0
          %300 = vst [vmem:[#allocation2 + $0x10] sm:$0xff] 0.0
          %301 = vst [vmem:[#allocation2 + $0x18] sm:$0xff] 0.0
          %302 = vst [vmem:[#allocation2 + $0x20] sm:$0xff] 0.0
          %303 = vst [vmem:[#allocation2 + $0x28] sm:$0xff] 0.0
          %304 = vst [vmem:[#allocation2 + $0x30] sm:$0xff] 0.0
          %305 = vst [vmem:[#allocation2 + $0x38] sm:$0xff] 0.0
          %306 = vst [vmem:[#allocation2 + $0x40] sm:$0xff] 0.0
          %307 = vst [vmem:[#allocation2 + $0x48] sm:$0xff] 0.0
          %308 = vst [vmem:[#allocation2 + $0x50] sm:$0xff] 0.0
          %309 = vst [vmem:[#allocation2 + $0x58] sm:$0xff] 0.0
          %310 = vst [vmem:[#allocation2 + $0x60] sm:$0xff] 0.0
          %311 = vst [vmem:[#allocation2 + $0x68] sm:$0xff] 0.0
          %312 = vst [vmem:[#allocation2 + $0x70] sm:$0xff] 0.0
          %313 = vst [vmem:[#allocation2 + $0x78] sm:$0xff] 0.0
        $region52: #{tpu_custom_call.1} parent=43 // pred_fallthru
          _
        %v314 = vld [vmem:[%s291] sm:$0xf]
        %v315 = vld [vmem:[%s291 + $0x4] sm:$0xf]
        %v316 = vld [vmem:[%s291 + $0x8] sm:$0xf]
        %v317 = vld [vmem:[%s291 + $0xc] sm:$0xf]
        %v318 = vld [vmem:[%s291 + $0x10] sm:$0xf]
        %v319 = vld [vmem:[%s291 + $0x14] sm:$0xf]
        %v320 = vld [vmem:[%s291 + $0x18] sm:$0xf]
        %v321 = vld [vmem:[%s291 + $0x1c] sm:$0xf]
        %v322 = vld [vmem:[%s1] sm:$0xf]
        %v323 = vld [vmem:[%s1 + $0x4] sm:$0xf]
        %v324 = vld [vmem:[%s1 + $0x8] sm:$0xf]
        %v325 = vld [vmem:[%s1 + $0xc] sm:$0xf]
        %v326 = vld [vmem:[%s2] sm:$0x1]
        %v328 = vlaneseq
        %v329 = vshrl.u32 %v328, 7
        %v330 = vsub.s32 0, %v329
        %v331 = vrot.slane %v326, %v330
        %v341 = vunpack.c.l.b16 %v314
        %v342 = vunpack.c.l.b16 %v315
        %v343 = vunpack.c.l.b16 %v316
        %v344 = vunpack.c.l.b16 %v317
        %v345 = vunpack.c.l.b16 %v318
        %v346 = vunpack.c.l.b16 %v319
        %v347 = vunpack.c.l.b16 %v320
        %v348 = vunpack.c.l.b16 %v321
        %v349 = vpack.c.b16 %v342, %v341
        %v350 = vpack.c.b16 %v344, %v343
        %v351 = vpack.c.b16 %v346, %v345
        %v352 = vpack.c.b16 %v348, %v347
        %v357 = vunpack.c.l.b16 %v322
        %v358 = vunpack.c.l.b16 %v323
        %v359 = vunpack.c.l.b16 %v324
        %v360 = vunpack.c.l.b16 %v325
        %v361 = vpack.c.b16 %v358, %v357
        %v362 = vpack.c.b16 %v360, %v359
        %vm365 = vcmask 261120
        %v367 = vsel %vm365, %v349, 0
        %v370 = vsel %vm365, %v350, 0
        %v373 = vsel %vm365, %v351, 0
        %v376 = vsel %vm365, %v352, 0
        %378 = vmatprep.subr.bf16.mxu0 0
        %379 = vmatpush1.bf16.msra.mxu0 0
        %380 = vmatprep.subr.bf16.mxu0 0
        %381 = vmatpush1.bf16.msra.mxu0 0
        %382 = vmatprep.subr.bf16.mxu0 0
        %383 = vmatpush1.bf16.msra.mxu0 0
        %384 = vmatprep.subr.bf16.mxu0 0
        %385 = vmatpush1.bf16.msra.mxu0 0
        %386 = vmatprep.subr.bf16.mxu0 0
        %387 = vmatpush1.bf16.msra.mxu0 0
        %388 = vmatprep.subr.bf16.mxu0 0
        %389 = vmatpush1.bf16.msra.mxu0 0
        %390 = vmatprep.subr.bf16.mxu0 0
        %391 = vmatpush1.bf16.msra.mxu0 %v362
        %392 = vmatprep.subr.bf16.mxu0 0
        %393 = vmatpush1.bf16.msra.mxu0 %v361
        %394 = vmatprep.subr.bf16.mxu0 0
        %395 = vmatpush2.bf16.msra.mxu0 0
        %396 = vmatprep.subr.bf16.mxu0 0
        %397 = vmatpush2.bf16.msra.mxu0 0
        %398 = vmatprep.subr.bf16.mxu0 0
        %399 = vmatpush2.bf16.msra.mxu0 0
        %400 = vmatprep.subr.bf16.mxu0 0
        %401 = vmatpush2.bf16.msra.mxu0 0
        %402 = vmatprep.subr.bf16.mxu0 0
        %403 = vmatpush2.bf16.msra.mxu0 0
        %404 = vmatprep.subr.bf16.mxu0 0
        %405 = vmatpush2.bf16.msra.mxu0 0
        %406 = vmatprep.subr.bf16.mxu0 0
        %407 = vmatpush2.bf16.msra.mxu0 0
        %408 = vmatprep.subr.bf16.mxu0 0
        %409 = vmatpush2.bf16.msra.mxu0 0
        %410 = vmatprep.mubr.bf16.mxu0 0
        %411 = vmatmul.mubr.bf16.gmra.mxu0 %v367
        %v412 = vpop.f32.mrf.mxu0
        %v413 = vadd.f32 %v331, %v412
        %v414 = vpop.f32.mrf.mxu0
        %v415 = vpop.f32.mrf.mxu0
        %v416 = vadd.f32 %v331, %v415
        %v417 = vpop.f32.mrf.mxu0
        %418 = vmatprep.mubr.bf16.mxu0 0
        %419 = vmatmul.mubr.bf16.gmra.mxu0 %v370
        %v420 = vpop.f32.mrf.mxu0
        %v421 = vadd.f32 %v331, %v420
        %v422 = vpop.f32.mrf.mxu0
        %v423 = vpop.f32.mrf.mxu0
        %v424 = vadd.f32 %v331, %v423
        %v425 = vpop.f32.mrf.mxu0
        %426 = vmatprep.mubr.bf16.mxu0 0
        %427 = vmatmul.mubr.bf16.gmra.mxu0 %v373
        %v428 = vpop.f32.mrf.mxu0
        %v429 = vadd.f32 %v331, %v428
        %v430 = vpop.f32.mrf.mxu0
        %v431 = vpop.f32.mrf.mxu0
        %v432 = vadd.f32 %v331, %v431
        %v433 = vpop.f32.mrf.mxu0
        %434 = vmatprep.mubr.bf16.mxu0 0
        %435 = vmatmul.mubr.bf16.gmra.mxu0 %v376
        %v436 = vpop.f32.mrf.mxu0
        %v437 = vadd.f32 %v331, %v436
        %v438 = vpop.f32.mrf.mxu0
        %v439 = vpop.f32.mrf.mxu0
        %v440 = vadd.f32 %v331, %v439
        %v441 = vpop.f32.mrf.mxu0
        %442 = vdwg.mxu0
        %v443 = vmax.f32 %v413, 0.0
        %v444 = vmax.f32 %v416, 0.0
        %v445 = vmax.f32 %v421, 0.0
        %v446 = vmax.f32 %v424, 0.0
        %v447 = vmax.f32 %v429, 0.0
        %v448 = vmax.f32 %v432, 0.0
        %v449 = vmax.f32 %v437, 0.0
        %v450 = vmax.f32 %v440, 0.0
        %v451 = vpack.c.bf16 %v444, %v443
        %v452 = vpack.c.bf16 %v446, %v445
        %v453 = vpack.c.bf16 %v448, %v447
        %v454 = vpack.c.bf16 %v450, %v449
        %v455 = vld [vmem:[#allocation3] sm:$0xff]
        %v456 = vld [vmem:[#allocation3 + $0x40] sm:$0xff]
        %v457 = vld [vmem:[#allocation3 + $0x80] sm:$0xff]
        %v458 = vld [vmem:[#allocation3 + $0xc0] sm:$0xff]
        %v459 = vld [vmem:[%s4] sm:$0x3]
        %v461 = vlaneseq
        %v462 = vshrl.u32 %v461, 7
        %v463 = vsub.s32 0, %v462
        %v464 = vrot.slane %v459, %v463
        %v465 = vlaneseq
        %v466 = vshrl.u32 %v465, 7
        %v467 = vsub.s32 1, %v466
        %v468 = vrot.slane %v459, %v467
        %v475 = vunpack.c.l.b16 %v455
        %v476 = vunpack.c.h.b16 %v455
        %v477 = vunpack.c.l.b16 %v456
        %v478 = vunpack.c.h.b16 %v456
        %v479 = vunpack.c.l.b16 %v457
        %v480 = vunpack.c.h.b16 %v457
        %v481 = vunpack.c.l.b16 %v458
        %v482 = vunpack.c.h.b16 %v458
        %v483 = vpack.c.b16 %v477, %v475
        %v484 = vpack.c.b16 %v478, %v476
        %v485 = vpack.c.b16 %v481, %v479
        %v486 = vpack.c.b16 %v482, %v480
        %v492 = vsel %vm365, %v451, 0
        %v495 = vsel %vm365, %v452, 0
        %v498 = vsel %vm365, %v453, 0
        %v501 = vsel %vm365, %v454, 0
        %503 = vmatprep.subr.bf16.mxu0 0
        %504 = vmatpush1.bf16.msra.mxu0 0
        %505 = vmatprep.subr.bf16.mxu0 0
        %506 = vmatpush1.bf16.msra.mxu0 0
        %507 = vmatprep.subr.bf16.mxu0 0
        %508 = vmatpush1.bf16.msra.mxu0 0
        %509 = vmatprep.subr.bf16.mxu0 0
        %510 = vmatpush1.bf16.msra.mxu0 0
        %511 = vmatprep.subr.bf16.mxu0 0
        %512 = vmatpush1.bf16.msra.mxu0 0
        %513 = vmatprep.subr.bf16.mxu0 0
        %514 = vmatpush1.bf16.msra.mxu0 0
        %515 = vmatprep.subr.bf16.mxu0 %v486
        %516 = vmatpush1.bf16.msra.mxu0 %v485
        %517 = vmatprep.subr.bf16.mxu0 %v484
        %518 = vmatpush1.bf16.msra.mxu0 %v483
        %519 = vmatprep.subr.bf16.mxu0 0
        %520 = vmatpush2.bf16.msra.mxu0 0
        %521 = vmatprep.subr.bf16.mxu0 0
        %522 = vmatpush2.bf16.msra.mxu0 0
        %523 = vmatprep.subr.bf16.mxu0 0
        %524 = vmatpush2.bf16.msra.mxu0 0
        %525 = vmatprep.subr.bf16.mxu0 0
        %526 = vmatpush2.bf16.msra.mxu0 0
        %527 = vmatprep.subr.bf16.mxu0 0
        %528 = vmatpush2.bf16.msra.mxu0 0
        %529 = vmatprep.subr.bf16.mxu0 0
        %530 = vmatpush2.bf16.msra.mxu0 0
        %531 = vmatprep.subr.bf16.mxu0 0
        %532 = vmatpush2.bf16.msra.mxu0 0
        %533 = vmatprep.subr.bf16.mxu0 0
        %534 = vmatpush2.bf16.msra.mxu0 0
        %535 = vmatprep.mubr.bf16.mxu0 0
        %536 = vmatmul.mubr.bf16.gmra.mxu0 %v492
        %v537 = vpop.f32.mrf.mxu0
        %v538 = vadd.f32 %v464, %v537
        %v539 = vpop.f32.mrf.mxu0
        %v540 = vadd.f32 %v468, %v539
        %v541 = vpop.f32.mrf.mxu0
        %v542 = vadd.f32 %v464, %v541
        %v543 = vpop.f32.mrf.mxu0
        %v544 = vadd.f32 %v468, %v543
        %545 = vmatprep.mubr.bf16.mxu0 0
        %546 = vmatmul.mubr.bf16.gmra.mxu0 %v495
        %v547 = vpop.f32.mrf.mxu0
        %v548 = vadd.f32 %v464, %v547
        %v549 = vpop.f32.mrf.mxu0
        %v550 = vadd.f32 %v468, %v549
        %v551 = vpop.f32.mrf.mxu0
        %v552 = vadd.f32 %v464, %v551
        %v553 = vpop.f32.mrf.mxu0
        %v554 = vadd.f32 %v468, %v553
        %555 = vmatprep.mubr.bf16.mxu0 0
        %556 = vmatmul.mubr.bf16.gmra.mxu0 %v498
        %v557 = vpop.f32.mrf.mxu0
        %v558 = vadd.f32 %v464, %v557
        %v559 = vpop.f32.mrf.mxu0
        %v560 = vadd.f32 %v468, %v559
        %v561 = vpop.f32.mrf.mxu0
        %v562 = vadd.f32 %v464, %v561
        %v563 = vpop.f32.mrf.mxu0
        %v564 = vadd.f32 %v468, %v563
        %565 = vmatprep.mubr.bf16.mxu0 0
        %566 = vmatmul.mubr.bf16.gmra.mxu0 %v501
        %v567 = vpop.f32.mrf.mxu0
        %v568 = vadd.f32 %v464, %v567
        %v569 = vpop.f32.mrf.mxu0
        %v570 = vadd.f32 %v468, %v569
        %v571 = vpop.f32.mrf.mxu0
        %v572 = vadd.f32 %v464, %v571
        %v573 = vpop.f32.mrf.mxu0
        %v574 = vadd.f32 %v468, %v573
        %575 = vdwg.mxu0
        %v576 = vmax.f32 %v538, 0.0
        %v577 = vmax.f32 %v540, 0.0
        %v578 = vmax.f32 %v542, 0.0
        %v579 = vmax.f32 %v544, 0.0
        %v580 = vmax.f32 %v548, 0.0
        %v581 = vmax.f32 %v550, 0.0
        %v582 = vmax.f32 %v552, 0.0
        %v583 = vmax.f32 %v554, 0.0
        %v584 = vmax.f32 %v558, 0.0
        %v585 = vmax.f32 %v560, 0.0
        %v586 = vmax.f32 %v562, 0.0
        %v587 = vmax.f32 %v564, 0.0
        %v588 = vmax.f32 %v568, 0.0
        %v589 = vmax.f32 %v570, 0.0
        %v590 = vmax.f32 %v572, 0.0
        %v591 = vmax.f32 %v574, 0.0
        %v592 = vld [vmem:[#allocation2] sm:$0xff]
        %v593 = vld [vmem:[#allocation2 + $0x8] sm:$0xff]
        %v594 = vadd.f32 %v576, %v578
        %v595 = vadd.f32 %v594, %v580
        %v596 = vadd.f32 %v595, %v582
        %v597 = vadd.f32 %v596, %v584
        %v598 = vadd.f32 %v597, %v586
        %v599 = vadd.f32 %v598, %v588
        %v600 = vadd.f32 %v599, %v590
        %v601 = vadd.f32 %v577, %v579
        %v602 = vadd.f32 %v601, %v581
        %v603 = vadd.f32 %v602, %v583
        %v604 = vadd.f32 %v603, %v585
        %v605 = vadd.f32 %v604, %v587
        %v606 = vadd.f32 %v605, %v589
        %v607 = vadd.f32 %v606, %v591
        %v608 = vadd.f32 %v592, %v600
        %v609 = vadd.f32 %v593, %v607
        %610 = vst [vmem:[#allocation2] sm:$0xff] %v608
        %611 = vst [vmem:[#allocation2 + $0x8] sm:$0xff] %v609
        %v612 = vld [vmem:[#allocation3 + $0x8] sm:$0xff]
        %v613 = vld [vmem:[#allocation3 + $0x48] sm:$0xff]
        %v614 = vld [vmem:[#allocation3 + $0x88] sm:$0xff]
        %v615 = vld [vmem:[#allocation3 + $0xc8] sm:$0xff]
        %v616 = vld [vmem:[%s4 + $0x2] sm:$0x3]
        %v618 = vlaneseq
        %v619 = vshrl.u32 %v618, 7
        %v620 = vsub.s32 0, %v619
        %v621 = vrot.slane %v616, %v620
        %v622 = vlaneseq
        %v623 = vshrl.u32 %v622, 7
        %v624 = vsub.s32 1, %v623
        %v625 = vrot.slane %v616, %v624
        %v632 = vunpack.c.l.b16 %v612
        %v633 = vunpack.c.h.b16 %v612
        %v634 = vunpack.c.l.b16 %v613
        %v635 = vunpack.c.h.b16 %v613
        %v636 = vunpack.c.l.b16 %v614
        %v637 = vunpack.c.h.b16 %v614
        %v638 = vunpack.c.l.b16 %v615
        %v639 = vunpack.c.h.b16 %v615
        %v640 = vpack.c.b16 %v634, %v632
        %v641 = vpack.c.b16 %v635, %v633
        %v642 = vpack.c.b16 %v638, %v636
        %v643 = vpack.c.b16 %v639, %v637
        %648 = vmatprep.subr.bf16.mxu0 0
        %649 = vmatpush1.bf16.msra.mxu0 0
        %650 = vmatprep.subr.bf16.mxu0 0
        %651 = vmatpush1.bf16.msra.mxu0 0
        %652 = vmatprep.subr.bf16.mxu0 0
        %653 = vmatpush1.bf16.msra.mxu0 0
        %654 = vmatprep.subr.bf16.mxu0 0
        %655 = vmatpush1.bf16.msra.mxu0 0
        %656 = vmatprep.subr.bf16.mxu0 0
        %657 = vmatpush1.bf16.msra.mxu0 0
        %658 = vmatprep.subr.bf16.mxu0 0
        %659 = vmatpush1.bf16.msra.mxu0 0
        %660 = vmatprep.subr.bf16.mxu0 %v643
        %661 = vmatpush1.bf16.msra.mxu0 %v642
        %662 = vmatprep.subr.bf16.mxu0 %v641
        %663 = vmatpush1.bf16.msra.mxu0 %v640
        %664 = vmatprep.subr.bf16.mxu0 0
        %665 = vmatpush2.bf16.msra.mxu0 0
        %666 = vmatprep.subr.bf16.mxu0 0
        %667 = vmatpush2.bf16.msra.mxu0 0
        %668 = vmatprep.subr.bf16.mxu0 0
        %669 = vmatpush2.bf16.msra.mxu0 0
        %670 = vmatprep.subr.bf16.mxu0 0
        %671 = vmatpush2.bf16.msra.mxu0 0
        %672 = vmatprep.subr.bf16.mxu0 0
        %673 = vmatpush2.bf16.msra.mxu0 0
        %674 = vmatprep.subr.bf16.mxu0 0
        %675 = vmatpush2.bf16.msra.mxu0 0
        %676 = vmatprep.subr.bf16.mxu0 0
        %677 = vmatpush2.bf16.msra.mxu0 0
        %678 = vmatprep.subr.bf16.mxu0 0
        %679 = vmatpush2.bf16.msra.mxu0 0
        %680 = vmatprep.mubr.bf16.mxu0 0
        %681 = vmatmul.mubr.bf16.gmra.mxu0 %v492
        %v682 = vpop.f32.mrf.mxu0
        %v683 = vadd.f32 %v621, %v682
        %v684 = vpop.f32.mrf.mxu0
        %v685 = vadd.f32 %v625, %v684
        %v686 = vpop.f32.mrf.mxu0
        %v687 = vadd.f32 %v621, %v686
        %v688 = vpop.f32.mrf.mxu0
        %v689 = vadd.f32 %v625, %v688
        %690 = vmatprep.mubr.bf16.mxu0 0
        %691 = vmatmul.mubr.bf16.gmra.mxu0 %v495
        %v692 = vpop.f32.mrf.mxu0
        %v693 = vadd.f32 %v621, %v692
        %v694 = vpop.f32.mrf.mxu0
        %v695 = vadd.f32 %v625, %v694
        %v696 = vpop.f32.mrf.mxu0
        %v697 = vadd.f32 %v621, %v696
        %v698 = vpop.f32.mrf.mxu0
        %v699 = vadd.f32 %v625, %v698
        %700 = vmatprep.mubr.bf16.mxu0 0
        %701 = vmatmul.mubr.bf16.gmra.mxu0 %v498
        %v702 = vpop.f32.mrf.mxu0
        %v703 = vadd.f32 %v621, %v702
        %v704 = vpop.f32.mrf.mxu0
        %v705 = vadd.f32 %v625, %v704
        %v706 = vpop.f32.mrf.mxu0
        %v707 = vadd.f32 %v621, %v706
        %v708 = vpop.f32.mrf.mxu0
        %v709 = vadd.f32 %v625, %v708
        %710 = vmatprep.mubr.bf16.mxu0 0
        %711 = vmatmul.mubr.bf16.gmra.mxu0 %v501
        %v712 = vpop.f32.mrf.mxu0
        %v713 = vadd.f32 %v621, %v712
        %v714 = vpop.f32.mrf.mxu0
        %v715 = vadd.f32 %v625, %v714
        %v716 = vpop.f32.mrf.mxu0
        %v717 = vadd.f32 %v621, %v716
        %v718 = vpop.f32.mrf.mxu0
        %v719 = vadd.f32 %v625, %v718
        %720 = vdwg.mxu0
        %v721 = vmax.f32 %v683, 0.0
        %v722 = vmax.f32 %v685, 0.0
        %v723 = vmax.f32 %v687, 0.0
        %v724 = vmax.f32 %v689, 0.0
        %v725 = vmax.f32 %v693, 0.0
        %v726 = vmax.f32 %v695, 0.0
        %v727 = vmax.f32 %v697, 0.0
        %v728 = vmax.f32 %v699, 0.0
        %v729 = vmax.f32 %v703, 0.0
        %v730 = vmax.f32 %v705, 0.0
        %v731 = vmax.f32 %v707, 0.0
        %v732 = vmax.f32 %v709, 0.0
        %v733 = vmax.f32 %v713, 0.0
        %v734 = vmax.f32 %v715, 0.0
        %v735 = vmax.f32 %v717, 0.0
        %v736 = vmax.f32 %v719, 0.0
        %v737 = vld [vmem:[#allocation2 + $0x10] sm:$0xff]
        %v738 = vld [vmem:[#allocation2 + $0x18] sm:$0xff]
        %v739 = vadd.f32 %v721, %v723
        %v740 = vadd.f32 %v739, %v725
        %v741 = vadd.f32 %v740, %v727
        %v742 = vadd.f32 %v741, %v729
        %v743 = vadd.f32 %v742, %v731
        %v744 = vadd.f32 %v743, %v733
        %v745 = vadd.f32 %v744, %v735
        %v746 = vadd.f32 %v722, %v724
        %v747 = vadd.f32 %v746, %v726
        %v748 = vadd.f32 %v747, %v728
        %v749 = vadd.f32 %v748, %v730
        %v750 = vadd.f32 %v749, %v732
        %v751 = vadd.f32 %v750, %v734
        %v752 = vadd.f32 %v751, %v736
        %v753 = vadd.f32 %v737, %v745
        %v754 = vadd.f32 %v738, %v752
        %755 = vst [vmem:[#allocation2 + $0x10] sm:$0xff] %v753
        %756 = vst [vmem:[#allocation2 + $0x18] sm:$0xff] %v754
        %v757 = vld [vmem:[#allocation3 + $0x10] sm:$0xff]
        %v758 = vld [vmem:[#allocation3 + $0x50] sm:$0xff]
        %v759 = vld [vmem:[#allocation3 + $0x90] sm:$0xff]
        %v760 = vld [vmem:[#allocation3 + $0xd0] sm:$0xff]
        %v761 = vld [vmem:[%s4 + $0x4] sm:$0x3]
        %v763 = vlaneseq
        %v764 = vshrl.u32 %v763, 7
        %v765 = vsub.s32 0, %v764
        %v766 = vrot.slane %v761, %v765
        %v767 = vlaneseq
        %v768 = vshrl.u32 %v767, 7
        %v769 = vsub.s32 1, %v768
        %v770 = vrot.slane %v761, %v769
        %v777 = vunpack.c.l.b16 %v757
        %v778 = vunpack.c.h.b16 %v757
        %v779 = vunpack.c.l.b16 %v758
        %v780 = vunpack.c.h.b16 %v758
        %v781 = vunpack.c.l.b16 %v759
        %v782 = vunpack.c.h.b16 %v759
        %v783 = vunpack.c.l.b16 %v760
        %v784 = vunpack.c.h.b16 %v760
        %v785 = vpack.c.b16 %v779, %v777
        %v786 = vpack.c.b16 %v780, %v778
        %v787 = vpack.c.b16 %v783, %v781
        %v788 = vpack.c.b16 %v784, %v782
        %793 = vmatprep.subr.bf16.mxu0 0
        %794 = vmatpush1.bf16.msra.mxu0 0
        %795 = vmatprep.subr.bf16.mxu0 0
        %796 = vmatpush1.bf16.msra.mxu0 0
        %797 = vmatprep.subr.bf16.mxu0 0
        %798 = vmatpush1.bf16.msra.mxu0 0
        %799 = vmatprep.subr.bf16.mxu0 0
        %800 = vmatpush1.bf16.msra.mxu0 0
        %801 = vmatprep.subr.bf16.mxu0 0
        %802 = vmatpush1.bf16.msra.mxu0 0
        %803 = vmatprep.subr.bf16.mxu0 0
        %804 = vmatpush1.bf16.msra.mxu0 0
        %805 = vmatprep.subr.bf16.mxu0 %v788
        %806 = vmatpush1.bf16.msra.mxu0 %v787
        %807 = vmatprep.subr.bf16.mxu0 %v786
        %808 = vmatpush1.bf16.msra.mxu0 %v785
        %809 = vmatprep.subr.bf16.mxu0 0
        %810 = vmatpush2.bf16.msra.mxu0 0
        %811 = vmatprep.subr.bf16.mxu0 0
        %812 = vmatpush2.bf16.msra.mxu0 0
        %813 = vmatprep.subr.bf16.mxu0 0
        %814 = vmatpush2.bf16.msra.mxu0 0
        %815 = vmatprep.subr.bf16.mxu0 0
        %816 = vmatpush2.bf16.msra.mxu0 0
        %817 = vmatprep.subr.bf16.mxu0 0
        %818 = vmatpush2.bf16.msra.mxu0 0
        %819 = vmatprep.subr.bf16.mxu0 0
        %820 = vmatpush2.bf16.msra.mxu0 0
        %821 = vmatprep.subr.bf16.mxu0 0
        %822 = vmatpush2.bf16.msra.mxu0 0
        %823 = vmatprep.subr.bf16.mxu0 0
        %824 = vmatpush2.bf16.msra.mxu0 0
        %825 = vmatprep.mubr.bf16.mxu0 0
        %826 = vmatmul.mubr.bf16.gmra.mxu0 %v492
        %v827 = vpop.f32.mrf.mxu0
        %v828 = vadd.f32 %v766, %v827
        %v829 = vpop.f32.mrf.mxu0
        %v830 = vadd.f32 %v770, %v829
        %v831 = vpop.f32.mrf.mxu0
        %v832 = vadd.f32 %v766, %v831
        %v833 = vpop.f32.mrf.mxu0
        %v834 = vadd.f32 %v770, %v833
        %835 = vmatprep.mubr.bf16.mxu0 0
        %836 = vmatmul.mubr.bf16.gmra.mxu0 %v495
        %v837 = vpop.f32.mrf.mxu0
        %v838 = vadd.f32 %v766, %v837
        %v839 = vpop.f32.mrf.mxu0
        %v840 = vadd.f32 %v770, %v839
        %v841 = vpop.f32.mrf.mxu0
        %v842 = vadd.f32 %v766, %v841
        %v843 = vpop.f32.mrf.mxu0
        %v844 = vadd.f32 %v770, %v843
        %845 = vmatprep.mubr.bf16.mxu0 0
        %846 = vmatmul.mubr.bf16.gmra.mxu0 %v498
        %v847 = vpop.f32.mrf.mxu0
        %v848 = vadd.f32 %v766, %v847
        %v849 = vpop.f32.mrf.mxu0
        %v850 = vadd.f32 %v770, %v849
        %v851 = vpop.f32.mrf.mxu0
        %v852 = vadd.f32 %v766, %v851
        %v853 = vpop.f32.mrf.mxu0
        %v854 = vadd.f32 %v770, %v853
        %855 = vmatprep.mubr.bf16.mxu0 0
        %856 = vmatmul.mubr.bf16.gmra.mxu0 %v501
        %v857 = vpop.f32.mrf.mxu0
        %v858 = vadd.f32 %v766, %v857
        %v859 = vpop.f32.mrf.mxu0
        %v860 = vadd.f32 %v770, %v859
        %v861 = vpop.f32.mrf.mxu0
        %v862 = vadd.f32 %v766, %v861
        %v863 = vpop.f32.mrf.mxu0
        %v864 = vadd.f32 %v770, %v863
        %865 = vdwg.mxu0
        %v866 = vmax.f32 %v828, 0.0
        %v867 = vmax.f32 %v830, 0.0
        %v868 = vmax.f32 %v832, 0.0
        %v869 = vmax.f32 %v834, 0.0
        %v870 = vmax.f32 %v838, 0.0
        %v871 = vmax.f32 %v840, 0.0
        %v872 = vmax.f32 %v842, 0.0
        %v873 = vmax.f32 %v844, 0.0
        %v874 = vmax.f32 %v848, 0.0
        %v875 = vmax.f32 %v850, 0.0
        %v876 = vmax.f32 %v852, 0.0
        %v877 = vmax.f32 %v854, 0.0
        %v878 = vmax.f32 %v858, 0.0
        %v879 = vmax.f32 %v860, 0.0
        %v880 = vmax.f32 %v862, 0.0
        %v881 = vmax.f32 %v864, 0.0
        %v882 = vld [vmem:[#allocation2 + $0x20] sm:$0xff]
        %v883 = vld [vmem:[#allocation2 + $0x28] sm:$0xff]
        %v884 = vadd.f32 %v866, %v868
        %v885 = vadd.f32 %v884, %v870
        %v886 = vadd.f32 %v885, %v872
        %v887 = vadd.f32 %v886, %v874
        %v888 = vadd.f32 %v887, %v876
        %v889 = vadd.f32 %v888, %v878
        %v890 = vadd.f32 %v889, %v880
        %v891 = vadd.f32 %v867, %v869
        %v892 = vadd.f32 %v891, %v871
        %v893 = vadd.f32 %v892, %v873
        %v894 = vadd.f32 %v893, %v875
        %v895 = vadd.f32 %v894, %v877
        %v896 = vadd.f32 %v895, %v879
        %v897 = vadd.f32 %v896, %v881
        %v898 = vadd.f32 %v882, %v890
        %v899 = vadd.f32 %v883, %v897
        %900 = vst [vmem:[#allocation2 + $0x20] sm:$0xff] %v898
        %901 = vst [vmem:[#allocation2 + $0x28] sm:$0xff] %v899
        %v902 = vld [vmem:[#allocation3 + $0x18] sm:$0xff]
        %v903 = vld [vmem:[#allocation3 + $0x58] sm:$0xff]
        %v904 = vld [vmem:[#allocation3 + $0x98] sm:$0xff]
        %v905 = vld [vmem:[#allocation3 + $0xd8] sm:$0xff]
        %v906 = vld [vmem:[%s4 + $0x6] sm:$0x3]
        %v908 = vlaneseq
        %v909 = vshrl.u32 %v908, 7
        %v910 = vsub.s32 0, %v909
        %v911 = vrot.slane %v906, %v910
        %v912 = vlaneseq
        %v913 = vshrl.u32 %v912, 7
        %v914 = vsub.s32 1, %v913
        %v915 = vrot.slane %v906, %v914
        %v922 = vunpack.c.l.b16 %v902
        %v923 = vunpack.c.h.b16 %v902
        %v924 = vunpack.c.l.b16 %v903
        %v925 = vunpack.c.h.b16 %v903
        %v926 = vunpack.c.l.b16 %v904
        %v927 = vunpack.c.h.b16 %v904
        %v928 = vunpack.c.l.b16 %v905
        %v929 = vunpack.c.h.b16 %v905
        %v930 = vpack.c.b16 %v924, %v922
        %v931 = vpack.c.b16 %v925, %v923
        %v932 = vpack.c.b16 %v928, %v926
        %v933 = vpack.c.b16 %v929, %v927
        %938 = vmatprep.subr.bf16.mxu0 0
        %939 = vmatpush1.bf16.msra.mxu0 0
        %940 = vmatprep.subr.bf16.mxu0 0
        %941 = vmatpush1.bf16.msra.mxu0 0
        %942 = vmatprep.subr.bf16.mxu0 0
        %943 = vmatpush1.bf16.msra.mxu0 0
        %944 = vmatprep.subr.bf16.mxu0 0
        %945 = vmatpush1.bf16.msra.mxu0 0
        %946 = vmatprep.subr.bf16.mxu0 0
        %947 = vmatpush1.bf16.msra.mxu0 0
        %948 = vmatprep.subr.bf16.mxu0 0
        %949 = vmatpush1.bf16.msra.mxu0 0
        %950 = vmatprep.subr.bf16.mxu0 %v933
        %951 = vmatpush1.bf16.msra.mxu0 %v932
        %952 = vmatprep.subr.bf16.mxu0 %v931
        %953 = vmatpush1.bf16.msra.mxu0 %v930
        %954 = vmatprep.subr.bf16.mxu0 0
        %955 = vmatpush2.bf16.msra.mxu0 0
        %956 = vmatprep.subr.bf16.mxu0 0
        %957 = vmatpush2.bf16.msra.mxu0 0
        %958 = vmatprep.subr.bf16.mxu0 0
        %959 = vmatpush2.bf16.msra.mxu0 0
        %960 = vmatprep.subr.bf16.mxu0 0
        %961 = vmatpush2.bf16.msra.mxu0 0
        %962 = vmatprep.subr.bf16.mxu0 0
        %963 = vmatpush2.bf16.msra.mxu0 0
        %964 = vmatprep.subr.bf16.mxu0 0
        %965 = vmatpush2.bf16.msra.mxu0 0
        %966 = vmatprep.subr.bf16.mxu0 0
        %967 = vmatpush2.bf16.msra.mxu0 0
        %968 = vmatprep.subr.bf16.mxu0 0
        %969 = vmatpush2.bf16.msra.mxu0 0
        %970 = vmatprep.mubr.bf16.mxu0 0
        %971 = vmatmul.mubr.bf16.gmra.mxu0 %v492
        %v972 = vpop.f32.mrf.mxu0
        %v973 = vadd.f32 %v911, %v972
        %v974 = vpop.f32.mrf.mxu0
        %v975 = vadd.f32 %v915, %v974
        %v976 = vpop.f32.mrf.mxu0
        %v977 = vadd.f32 %v911, %v976
        %v978 = vpop.f32.mrf.mxu0
        %v979 = vadd.f32 %v915, %v978
        %980 = vmatprep.mubr.bf16.mxu0 0
        %981 = vmatmul.mubr.bf16.gmra.mxu0 %v495
        %v982 = vpop.f32.mrf.mxu0
        %v983 = vadd.f32 %v911, %v982
        %v984 = vpop.f32.mrf.mxu0
        %v985 = vadd.f32 %v915, %v984
        %v986 = vpop.f32.mrf.mxu0
        %v987 = vadd.f32 %v911, %v986
        %v988 = vpop.f32.mrf.mxu0
        %v989 = vadd.f32 %v915, %v988
        %990 = vmatprep.mubr.bf16.mxu0 0
        %991 = vmatmul.mubr.bf16.gmra.mxu0 %v498
        %v992 = vpop.f32.mrf.mxu0
        %v993 = vadd.f32 %v911, %v992
        %v994 = vpop.f32.mrf.mxu0
        %v995 = vadd.f32 %v915, %v994
        %v996 = vpop.f32.mrf.mxu0
        %v997 = vadd.f32 %v911, %v996
        %v998 = vpop.f32.mrf.mxu0
        %v999 = vadd.f32 %v915, %v998
        %1000 = vmatprep.mubr.bf16.mxu0 0
        %1001 = vmatmul.mubr.bf16.gmra.mxu0 %v501
        %v1002 = vpop.f32.mrf.mxu0
        %v1003 = vadd.f32 %v911, %v1002
        %v1004 = vpop.f32.mrf.mxu0
        %v1005 = vadd.f32 %v915, %v1004
        %v1006 = vpop.f32.mrf.mxu0
        %v1007 = vadd.f32 %v911, %v1006
        %v1008 = vpop.f32.mrf.mxu0
        %v1009 = vadd.f32 %v915, %v1008
        %1010 = vdwg.mxu0
        %v1011 = vmax.f32 %v973, 0.0
        %v1012 = vmax.f32 %v975, 0.0
        %v1013 = vmax.f32 %v977, 0.0
        %v1014 = vmax.f32 %v979, 0.0
        %v1015 = vmax.f32 %v983, 0.0
        %v1016 = vmax.f32 %v985, 0.0
        %v1017 = vmax.f32 %v987, 0.0
        %v1018 = vmax.f32 %v989, 0.0
        %v1019 = vmax.f32 %v993, 0.0
        %v1020 = vmax.f32 %v995, 0.0
        %v1021 = vmax.f32 %v997, 0.0
        %v1022 = vmax.f32 %v999, 0.0
        %v1023 = vmax.f32 %v1003, 0.0
        %v1024 = vmax.f32 %v1005, 0.0
        %v1025 = vmax.f32 %v1007, 0.0
        %v1026 = vmax.f32 %v1009, 0.0
        %v1027 = vld [vmem:[#allocation2 + $0x30] sm:$0xff]
        %v1028 = vld [vmem:[#allocation2 + $0x38] sm:$0xff]
        %v1029 = vadd.f32 %v1011, %v1013
        %v1030 = vadd.f32 %v1029, %v1015
        %v1031 = vadd.f32 %v1030, %v1017
        %v1032 = vadd.f32 %v1031, %v1019
        %v1033 = vadd.f32 %v1032, %v1021
        %v1034 = vadd.f32 %v1033, %v1023
        %v1035 = vadd.f32 %v1034, %v1025
        %v1036 = vadd.f32 %v1012, %v1014
        %v1037 = vadd.f32 %v1036, %v1016
        %v1038 = vadd.f32 %v1037, %v1018
        %v1039 = vadd.f32 %v1038, %v1020
        %v1040 = vadd.f32 %v1039, %v1022
        %v1041 = vadd.f32 %v1040, %v1024
        %v1042 = vadd.f32 %v1041, %v1026
        %v1043 = vadd.f32 %v1027, %v1035
        %v1044 = vadd.f32 %v1028, %v1042
        %1045 = vst [vmem:[#allocation2 + $0x30] sm:$0xff] %v1043
        %1046 = vst [vmem:[#allocation2 + $0x38] sm:$0xff] %v1044
        %v1047 = vld [vmem:[#allocation3 + $0x20] sm:$0xff]
        %v1048 = vld [vmem:[#allocation3 + $0x60] sm:$0xff]
        %v1049 = vld [vmem:[#allocation3 + $0xa0] sm:$0xff]
        %v1050 = vld [vmem:[#allocation3 + $0xe0] sm:$0xff]
        %v1051 = vld [vmem:[%s4 + $0x8] sm:$0x3]
        %v1053 = vlaneseq
        %v1054 = vshrl.u32 %v1053, 7
        %v1055 = vsub.s32 0, %v1054
        %v1056 = vrot.slane %v1051, %v1055
        %v1057 = vlaneseq
        %v1058 = vshrl.u32 %v1057, 7
        %v1059 = vsub.s32 1, %v1058
        %v1060 = vrot.slane %v1051, %v1059
        %v1067 = vunpack.c.l.b16 %v1047
        %v1068 = vunpack.c.h.b16 %v1047
        %v1069 = vunpack.c.l.b16 %v1048
        %v1070 = vunpack.c.h.b16 %v1048
        %v1071 = vunpack.c.l.b16 %v1049
        %v1072 = vunpack.c.h.b16 %v1049
        %v1073 = vunpack.c.l.b16 %v1050
        %v1074 = vunpack.c.h.b16 %v1050
        %v1075 = vpack.c.b16 %v1069, %v1067
        %v1076 = vpack.c.b16 %v1070, %v1068
        %v1077 = vpack.c.b16 %v1073, %v1071
        %v1078 = vpack.c.b16 %v1074, %v1072
        %1083 = vmatprep.subr.bf16.mxu0 0
        %1084 = vmatpush1.bf16.msra.mxu0 0
        %1085 = vmatprep.subr.bf16.mxu0 0
        %1086 = vmatpush1.bf16.msra.mxu0 0
        %1087 = vmatprep.subr.bf16.mxu0 0
        %1088 = vmatpush1.bf16.msra.mxu0 0
        %1089 = vmatprep.subr.bf16.mxu0 0
        %1090 = vmatpush1.bf16.msra.mxu0 0
        %1091 = vmatprep.subr.bf16.mxu0 0
        %1092 = vmatpush1.bf16.msra.mxu0 0
        %1093 = vmatprep.subr.bf16.mxu0 0
        %1094 = vmatpush1.bf16.msra.mxu0 0
        %1095 = vmatprep.subr.bf16.mxu0 %v1078
        %1096 = vmatpush1.bf16.msra.mxu0 %v1077
        %1097 = vmatprep.subr.bf16.mxu0 %v1076
        %1098 = vmatpush1.bf16.msra.mxu0 %v1075
        %1099 = vmatprep.subr.bf16.mxu0 0
        %1100 = vmatpush2.bf16.msra.mxu0 0
        %1101 = vmatprep.subr.bf16.mxu0 0
        %1102 = vmatpush2.bf16.msra.mxu0 0
        %1103 = vmatprep.subr.bf16.mxu0 0
        %1104 = vmatpush2.bf16.msra.mxu0 0
        %1105 = vmatprep.subr.bf16.mxu0 0
        %1106 = vmatpush2.bf16.msra.mxu0 0
        %1107 = vmatprep.subr.bf16.mxu0 0
        %1108 = vmatpush2.bf16.msra.mxu0 0
        %1109 = vmatprep.subr.bf16.mxu0 0
        %1110 = vmatpush2.bf16.msra.mxu0 0
        %1111 = vmatprep.subr.bf16.mxu0 0
        %1112 = vmatpush2.bf16.msra.mxu0 0
        %1113 = vmatprep.subr.bf16.mxu0 0
        %1114 = vmatpush2.bf16.msra.mxu0 0
        %1115 = vmatprep.mubr.bf16.mxu0 0
        %1116 = vmatmul.mubr.bf16.gmra.mxu0 %v492
        %v1117 = vpop.f32.mrf.mxu0
        %v1118 = vadd.f32 %v1056, %v1117
        %v1119 = vpop.f32.mrf.mxu0
        %v1120 = vadd.f32 %v1060, %v1119
        %v1121 = vpop.f32.mrf.mxu0
        %v1122 = vadd.f32 %v1056, %v1121
        %v1123 = vpop.f32.mrf.mxu0
        %v1124 = vadd.f32 %v1060, %v1123
        %1125 = vmatprep.mubr.bf16.mxu0 0
        %1126 = vmatmul.mubr.bf16.gmra.mxu0 %v495
        %v1127 = vpop.f32.mrf.mxu0
        %v1128 = vadd.f32 %v1056, %v1127
        %v1129 = vpop.f32.mrf.mxu0
        %v1130 = vadd.f32 %v1060, %v1129
        %v1131 = vpop.f32.mrf.mxu0
        %v1132 = vadd.f32 %v1056, %v1131
        %v1133 = vpop.f32.mrf.mxu0
        %v1134 = vadd.f32 %v1060, %v1133
        %1135 = vmatprep.mubr.bf16.mxu0 0
        %1136 = vmatmul.mubr.bf16.gmra.mxu0 %v498
        %v1137 = vpop.f32.mrf.mxu0
        %v1138 = vadd.f32 %v1056, %v1137
        %v1139 = vpop.f32.mrf.mxu0
        %v1140 = vadd.f32 %v1060, %v1139
        %v1141 = vpop.f32.mrf.mxu0
        %v1142 = vadd.f32 %v1056, %v1141
        %v1143 = vpop.f32.mrf.mxu0
        %v1144 = vadd.f32 %v1060, %v1143
        %1145 = vmatprep.mubr.bf16.mxu0 0
        %1146 = vmatmul.mubr.bf16.gmra.mxu0 %v501
        %v1147 = vpop.f32.mrf.mxu0
        %v1148 = vadd.f32 %v1056, %v1147
        %v1149 = vpop.f32.mrf.mxu0
        %v1150 = vadd.f32 %v1060, %v1149
        %v1151 = vpop.f32.mrf.mxu0
        %v1152 = vadd.f32 %v1056, %v1151
        %v1153 = vpop.f32.mrf.mxu0
        %v1154 = vadd.f32 %v1060, %v1153
        %1155 = vdwg.mxu0
        %v1156 = vmax.f32 %v1118, 0.0
        %v1157 = vmax.f32 %v1120, 0.0
        %v1158 = vmax.f32 %v1122, 0.0
        %v1159 = vmax.f32 %v1124, 0.0
        %v1160 = vmax.f32 %v1128, 0.0
        %v1161 = vmax.f32 %v1130, 0.0
        %v1162 = vmax.f32 %v1132, 0.0
        %v1163 = vmax.f32 %v1134, 0.0
        %v1164 = vmax.f32 %v1138, 0.0
        %v1165 = vmax.f32 %v1140, 0.0
        %v1166 = vmax.f32 %v1142, 0.0
        %v1167 = vmax.f32 %v1144, 0.0
        %v1168 = vmax.f32 %v1148, 0.0
        %v1169 = vmax.f32 %v1150, 0.0
        %v1170 = vmax.f32 %v1152, 0.0
        %v1171 = vmax.f32 %v1154, 0.0
        %v1172 = vld [vmem:[#allocation2 + $0x40] sm:$0xff]
        %v1173 = vld [vmem:[#allocation2 + $0x48] sm:$0xff]
        %v1174 = vadd.f32 %v1156, %v1158
        %v1175 = vadd.f32 %v1174, %v1160
        %v1176 = vadd.f32 %v1175, %v1162
        %v1177 = vadd.f32 %v1176, %v1164
        %v1178 = vadd.f32 %v1177, %v1166
        %v1179 = vadd.f32 %v1178, %v1168
        %v1180 = vadd.f32 %v1179, %v1170
        %v1181 = vadd.f32 %v1157, %v1159
        %v1182 = vadd.f32 %v1181, %v1161
        %v1183 = vadd.f32 %v1182, %v1163
        %v1184 = vadd.f32 %v1183, %v1165
        %v1185 = vadd.f32 %v1184, %v1167
        %v1186 = vadd.f32 %v1185, %v1169
        %v1187 = vadd.f32 %v1186, %v1171
        %v1188 = vadd.f32 %v1172, %v1180
        %v1189 = vadd.f32 %v1173, %v1187
        %1190 = vst [vmem:[#allocation2 + $0x40] sm:$0xff] %v1188
        %1191 = vst [vmem:[#allocation2 + $0x48] sm:$0xff] %v1189
        %v1192 = vld [vmem:[#allocation3 + $0x28] sm:$0xff]
        %v1193 = vld [vmem:[#allocation3 + $0x68] sm:$0xff]
        %v1194 = vld [vmem:[#allocation3 + $0xa8] sm:$0xff]
        %v1195 = vld [vmem:[#allocation3 + $0xe8] sm:$0xff]
        %v1196 = vld [vmem:[%s4 + $0xa] sm:$0x3]
        %v1198 = vlaneseq
        %v1199 = vshrl.u32 %v1198, 7
        %v1200 = vsub.s32 0, %v1199
        %v1201 = vrot.slane %v1196, %v1200
        %v1202 = vlaneseq
        %v1203 = vshrl.u32 %v1202, 7
        %v1204 = vsub.s32 1, %v1203
        %v1205 = vrot.slane %v1196, %v1204
        %v1212 = vunpack.c.l.b16 %v1192
        %v1213 = vunpack.c.h.b16 %v1192
        %v1214 = vunpack.c.l.b16 %v1193
        %v1215 = vunpack.c.h.b16 %v1193
        %v1216 = vunpack.c.l.b16 %v1194
        %v1217 = vunpack.c.h.b16 %v1194
        %v1218 = vunpack.c.l.b16 %v1195
        %v1219 = vunpack.c.h.b16 %v1195
        %v1220 = vpack.c.b16 %v1214, %v1212
        %v1221 = vpack.c.b16 %v1215, %v1213
        %v1222 = vpack.c.b16 %v1218, %v1216
        %v1223 = vpack.c.b16 %v1219, %v1217
        %1228 = vmatprep.subr.bf16.mxu0 0
        %1229 = vmatpush1.bf16.msra.mxu0 0
        %1230 = vmatprep.subr.bf16.mxu0 0
        %1231 = vmatpush1.bf16.msra.mxu0 0
        %1232 = vmatprep.subr.bf16.mxu0 0
        %1233 = vmatpush1.bf16.msra.mxu0 0
        %1234 = vmatprep.subr.bf16.mxu0 0
        %1235 = vmatpush1.bf16.msra.mxu0 0
        %1236 = vmatprep.subr.bf16.mxu0 0
        %1237 = vmatpush1.bf16.msra.mxu0 0
        %1238 = vmatprep.subr.bf16.mxu0 0
        %1239 = vmatpush1.bf16.msra.mxu0 0
        %1240 = vmatprep.subr.bf16.mxu0 %v1223
        %1241 = vmatpush1.bf16.msra.mxu0 %v1222
        %1242 = vmatprep.subr.bf16.mxu0 %v1221
        %1243 = vmatpush1.bf16.msra.mxu0 %v1220
        %1244 = vmatprep.subr.bf16.mxu0 0
        %1245 = vmatpush2.bf16.msra.mxu0 0
        %1246 = vmatprep.subr.bf16.mxu0 0
        %1247 = vmatpush2.bf16.msra.mxu0 0
        %1248 = vmatprep.subr.bf16.mxu0 0
        %1249 = vmatpush2.bf16.msra.mxu0 0
        %1250 = vmatprep.subr.bf16.mxu0 0
        %1251 = vmatpush2.bf16.msra.mxu0 0
        %1252 = vmatprep.subr.bf16.mxu0 0
        %1253 = vmatpush2.bf16.msra.mxu0 0
        %1254 = vmatprep.subr.bf16.mxu0 0
        %1255 = vmatpush2.bf16.msra.mxu0 0
        %1256 = vmatprep.subr.bf16.mxu0 0
        %1257 = vmatpush2.bf16.msra.mxu0 0
        %1258 = vmatprep.subr.bf16.mxu0 0
        %1259 = vmatpush2.bf16.msra.mxu0 0
        %1260 = vmatprep.mubr.bf16.mxu0 0
        %1261 = vmatmul.mubr.bf16.gmra.mxu0 %v492
        %v1262 = vpop.f32.mrf.mxu0
        %v1263 = vadd.f32 %v1201, %v1262
        %v1264 = vpop.f32.mrf.mxu0
        %v1265 = vadd.f32 %v1205, %v1264
        %v1266 = vpop.f32.mrf.mxu0
        %v1267 = vadd.f32 %v1201, %v1266
        %v1268 = vpop.f32.mrf.mxu0
        %v1269 = vadd.f32 %v1205, %v1268
        %1270 = vmatprep.mubr.bf16.mxu0 0
        %1271 = vmatmul.mubr.bf16.gmra.mxu0 %v495
        %v1272 = vpop.f32.mrf.mxu0
        %v1273 = vadd.f32 %v1201, %v1272
        %v1274 = vpop.f32.mrf.mxu0
        %v1275 = vadd.f32 %v1205, %v1274
        %v1276 = vpop.f32.mrf.mxu0
        %v1277 = vadd.f32 %v1201, %v1276
        %v1278 = vpop.f32.mrf.mxu0
        %v1279 = vadd.f32 %v1205, %v1278
        %1280 = vmatprep.mubr.bf16.mxu0 0
        %1281 = vmatmul.mubr.bf16.gmra.mxu0 %v498
        %v1282 = vpop.f32.mrf.mxu0
        %v1283 = vadd.f32 %v1201, %v1282
        %v1284 = vpop.f32.mrf.mxu0
        %v1285 = vadd.f32 %v1205, %v1284
        %v1286 = vpop.f32.mrf.mxu0
        %v1287 = vadd.f32 %v1201, %v1286
        %v1288 = vpop.f32.mrf.mxu0
        %v1289 = vadd.f32 %v1205, %v1288
        %1290 = vmatprep.mubr.bf16.mxu0 0
        %1291 = vmatmul.mubr.bf16.gmra.mxu0 %v501
        %v1292 = vpop.f32.mrf.mxu0
        %v1293 = vadd.f32 %v1201, %v1292
        %v1294 = vpop.f32.mrf.mxu0
        %v1295 = vadd.f32 %v1205, %v1294
        %v1296 = vpop.f32.mrf.mxu0
        %v1297 = vadd.f32 %v1201, %v1296
        %v1298 = vpop.f32.mrf.mxu0
        %v1299 = vadd.f32 %v1205, %v1298
        %1300 = vdwg.mxu0
        %v1301 = vmax.f32 %v1263, 0.0
        %v1302 = vmax.f32 %v1265, 0.0
        %v1303 = vmax.f32 %v1267, 0.0
        %v1304 = vmax.f32 %v1269, 0.0
        %v1305 = vmax.f32 %v1273, 0.0
        %v1306 = vmax.f32 %v1275, 0.0
        %v1307 = vmax.f32 %v1277, 0.0
        %v1308 = vmax.f32 %v1279, 0.0
        %v1309 = vmax.f32 %v1283, 0.0
        %v1310 = vmax.f32 %v1285, 0.0
        %v1311 = vmax.f32 %v1287, 0.0
        %v1312 = vmax.f32 %v1289, 0.0
        %v1313 = vmax.f32 %v1293, 0.0
        %v1314 = vmax.f32 %v1295, 0.0
        %v1315 = vmax.f32 %v1297, 0.0
        %v1316 = vmax.f32 %v1299, 0.0
        %v1317 = vld [vmem:[#allocation2 + $0x50] sm:$0xff]
        %v1318 = vld [vmem:[#allocation2 + $0x58] sm:$0xff]
        %v1319 = vadd.f32 %v1301, %v1303
        %v1320 = vadd.f32 %v1319, %v1305
        %v1321 = vadd.f32 %v1320, %v1307
        %v1322 = vadd.f32 %v1321, %v1309
        %v1323 = vadd.f32 %v1322, %v1311
        %v1324 = vadd.f32 %v1323, %v1313
        %v1325 = vadd.f32 %v1324, %v1315
        %v1326 = vadd.f32 %v1302, %v1304
        %v1327 = vadd.f32 %v1326, %v1306
        %v1328 = vadd.f32 %v1327, %v1308
        %v1329 = vadd.f32 %v1328, %v1310
        %v1330 = vadd.f32 %v1329, %v1312
        %v1331 = vadd.f32 %v1330, %v1314
        %v1332 = vadd.f32 %v1331, %v1316
        %v1333 = vadd.f32 %v1317, %v1325
        %v1334 = vadd.f32 %v1318, %v1332
        %1335 = vst [vmem:[#allocation2 + $0x50] sm:$0xff] %v1333
        %1336 = vst [vmem:[#allocation2 + $0x58] sm:$0xff] %v1334
        %v1337 = vld [vmem:[#allocation3 + $0x30] sm:$0xff]
        %v1338 = vld [vmem:[#allocation3 + $0x70] sm:$0xff]
        %v1339 = vld [vmem:[#allocation3 + $0xb0] sm:$0xff]
        %v1340 = vld [vmem:[#allocation3 + $0xf0] sm:$0xff]
        %v1341 = vld [vmem:[%s4 + $0xc] sm:$0x3]
        %v1343 = vlaneseq
        %v1344 = vshrl.u32 %v1343, 7
        %v1345 = vsub.s32 0, %v1344
        %v1346 = vrot.slane %v1341, %v1345
        %v1347 = vlaneseq
        %v1348 = vshrl.u32 %v1347, 7
        %v1349 = vsub.s32 1, %v1348
        %v1350 = vrot.slane %v1341, %v1349
        %v1357 = vunpack.c.l.b16 %v1337
        %v1358 = vunpack.c.h.b16 %v1337
        %v1359 = vunpack.c.l.b16 %v1338
        %v1360 = vunpack.c.h.b16 %v1338
        %v1361 = vunpack.c.l.b16 %v1339
        %v1362 = vunpack.c.h.b16 %v1339
        %v1363 = vunpack.c.l.b16 %v1340
        %v1364 = vunpack.c.h.b16 %v1340
        %v1365 = vpack.c.b16 %v1359, %v1357
        %v1366 = vpack.c.b16 %v1360, %v1358
        %v1367 = vpack.c.b16 %v1363, %v1361
        %v1368 = vpack.c.b16 %v1364, %v1362
        %1373 = vmatprep.subr.bf16.mxu0 0
        %1374 = vmatpush1.bf16.msra.mxu0 0
        %1375 = vmatprep.subr.bf16.mxu0 0
        %1376 = vmatpush1.bf16.msra.mxu0 0
        %1377 = vmatprep.subr.bf16.mxu0 0
        %1378 = vmatpush1.bf16.msra.mxu0 0
        %1379 = vmatprep.subr.bf16.mxu0 0
        %1380 = vmatpush1.bf16.msra.mxu0 0
        %1381 = vmatprep.subr.bf16.mxu0 0
        %1382 = vmatpush1.bf16.msra.mxu0 0
        %1383 = vmatprep.subr.bf16.mxu0 0
        %1384 = vmatpush1.bf16.msra.mxu0 0
        %1385 = vmatprep.subr.bf16.mxu0 %v1368
        %1386 = vmatpush1.bf16.msra.mxu0 %v1367
        %1387 = vmatprep.subr.bf16.mxu0 %v1366
        %1388 = vmatpush1.bf16.msra.mxu0 %v1365
        %1389 = vmatprep.subr.bf16.mxu0 0
        %1390 = vmatpush2.bf16.msra.mxu0 0
        %1391 = vmatprep.subr.bf16.mxu0 0
        %1392 = vmatpush2.bf16.msra.mxu0 0
        %1393 = vmatprep.subr.bf16.mxu0 0
        %1394 = vmatpush2.bf16.msra.mxu0 0
        %1395 = vmatprep.subr.bf16.mxu0 0
        %1396 = vmatpush2.bf16.msra.mxu0 0
        %1397 = vmatprep.subr.bf16.mxu0 0
        %1398 = vmatpush2.bf16.msra.mxu0 0
        %1399 = vmatprep.subr.bf16.mxu0 0
        %1400 = vmatpush2.bf16.msra.mxu0 0
        %1401 = vmatprep.subr.bf16.mxu0 0
        %1402 = vmatpush2.bf16.msra.mxu0 0
        %1403 = vmatprep.subr.bf16.mxu0 0
        %1404 = vmatpush2.bf16.msra.mxu0 0
        %1405 = vmatprep.mubr.bf16.mxu0 0
        %1406 = vmatmul.mubr.bf16.gmra.mxu0 %v492
        %v1407 = vpop.f32.mrf.mxu0
        %v1408 = vadd.f32 %v1346, %v1407
        %v1409 = vpop.f32.mrf.mxu0
        %v1410 = vadd.f32 %v1350, %v1409
        %v1411 = vpop.f32.mrf.mxu0
        %v1412 = vadd.f32 %v1346, %v1411
        %v1413 = vpop.f32.mrf.mxu0
        %v1414 = vadd.f32 %v1350, %v1413
        %1415 = vmatprep.mubr.bf16.mxu0 0
        %1416 = vmatmul.mubr.bf16.gmra.mxu0 %v495
        %v1417 = vpop.f32.mrf.mxu0
        %v1418 = vadd.f32 %v1346, %v1417
        %v1419 = vpop.f32.mrf.mxu0
        %v1420 = vadd.f32 %v1350, %v1419
        %v1421 = vpop.f32.mrf.mxu0
        %v1422 = vadd.f32 %v1346, %v1421
        %v1423 = vpop.f32.mrf.mxu0
        %v1424 = vadd.f32 %v1350, %v1423
        %1425 = vmatprep.mubr.bf16.mxu0 0
        %1426 = vmatmul.mubr.bf16.gmra.mxu0 %v498
        %v1427 = vpop.f32.mrf.mxu0
        %v1428 = vadd.f32 %v1346, %v1427
        %v1429 = vpop.f32.mrf.mxu0
        %v1430 = vadd.f32 %v1350, %v1429
        %v1431 = vpop.f32.mrf.mxu0
        %v1432 = vadd.f32 %v1346, %v1431
        %v1433 = vpop.f32.mrf.mxu0
        %v1434 = vadd.f32 %v1350, %v1433
        %1435 = vmatprep.mubr.bf16.mxu0 0
        %1436 = vmatmul.mubr.bf16.gmra.mxu0 %v501
        %v1437 = vpop.f32.mrf.mxu0
        %v1438 = vadd.f32 %v1346, %v1437
        %v1439 = vpop.f32.mrf.mxu0
        %v1440 = vadd.f32 %v1350, %v1439
        %v1441 = vpop.f32.mrf.mxu0
        %v1442 = vadd.f32 %v1346, %v1441
        %v1443 = vpop.f32.mrf.mxu0
        %v1444 = vadd.f32 %v1350, %v1443
        %1445 = vdwg.mxu0
        %v1446 = vmax.f32 %v1408, 0.0
        %v1447 = vmax.f32 %v1410, 0.0
        %v1448 = vmax.f32 %v1412, 0.0
        %v1449 = vmax.f32 %v1414, 0.0
        %v1450 = vmax.f32 %v1418, 0.0
        %v1451 = vmax.f32 %v1420, 0.0
        %v1452 = vmax.f32 %v1422, 0.0
        %v1453 = vmax.f32 %v1424, 0.0
        %v1454 = vmax.f32 %v1428, 0.0
        %v1455 = vmax.f32 %v1430, 0.0
        %v1456 = vmax.f32 %v1432, 0.0
        %v1457 = vmax.f32 %v1434, 0.0
        %v1458 = vmax.f32 %v1438, 0.0
        %v1459 = vmax.f32 %v1440, 0.0
        %v1460 = vmax.f32 %v1442, 0.0
        %v1461 = vmax.f32 %v1444, 0.0
        %v1462 = vld [vmem:[#allocation2 + $0x60] sm:$0xff]
        %v1463 = vld [vmem:[#allocation2 + $0x68] sm:$0xff]
        %v1464 = vadd.f32 %v1446, %v1448
        %v1465 = vadd.f32 %v1464, %v1450
        %v1466 = vadd.f32 %v1465, %v1452
        %v1467 = vadd.f32 %v1466, %v1454
        %v1468 = vadd.f32 %v1467, %v1456
        %v1469 = vadd.f32 %v1468, %v1458
        %v1470 = vadd.f32 %v1469, %v1460
        %v1471 = vadd.f32 %v1447, %v1449
        %v1472 = vadd.f32 %v1471, %v1451
        %v1473 = vadd.f32 %v1472, %v1453
        %v1474 = vadd.f32 %v1473, %v1455
        %v1475 = vadd.f32 %v1474, %v1457
        %v1476 = vadd.f32 %v1475, %v1459
        %v1477 = vadd.f32 %v1476, %v1461
        %v1478 = vadd.f32 %v1462, %v1470
        %v1479 = vadd.f32 %v1463, %v1477
        %1480 = vst [vmem:[#allocation2 + $0x60] sm:$0xff] %v1478
        %1481 = vst [vmem:[#allocation2 + $0x68] sm:$0xff] %v1479
        %v1482 = vld [vmem:[#allocation3 + $0x38] sm:$0xff]
        %v1483 = vld [vmem:[#allocation3 + $0x78] sm:$0xff]
        %v1484 = vld [vmem:[#allocation3 + $0xb8] sm:$0xff]
        %v1485 = vld [vmem:[#allocation3 + $0xf8] sm:$0xff]
        %v1486 = vld [vmem:[%s4 + $0xe] sm:$0x3]
        %v1488 = vlaneseq
        %v1489 = vshrl.u32 %v1488, 7
        %v1490 = vsub.s32 0, %v1489
        %v1491 = vrot.slane %v1486, %v1490
        %v1492 = vlaneseq
        %v1493 = vshrl.u32 %v1492, 7
        %v1494 = vsub.s32 1, %v1493
        %v1495 = vrot.slane %v1486, %v1494
        %v1502 = vunpack.c.l.b16 %v1482
        %v1503 = vunpack.c.h.b16 %v1482
        %v1504 = vunpack.c.l.b16 %v1483
        %v1505 = vunpack.c.h.b16 %v1483
        %v1506 = vunpack.c.l.b16 %v1484
        %v1507 = vunpack.c.h.b16 %v1484
        %v1508 = vunpack.c.l.b16 %v1485
        %v1509 = vunpack.c.h.b16 %v1485
        %v1510 = vpack.c.b16 %v1504, %v1502
        %v1511 = vpack.c.b16 %v1505, %v1503
        %v1512 = vpack.c.b16 %v1508, %v1506
        %v1513 = vpack.c.b16 %v1509, %v1507
        %1518 = vmatprep.subr.bf16.mxu0 0
        %1519 = vmatpush1.bf16.msra.mxu0 0
        %1520 = vmatprep.subr.bf16.mxu0 0
        %1521 = vmatpush1.bf16.msra.mxu0 0
        %1522 = vmatprep.subr.bf16.mxu0 0
        %1523 = vmatpush1.bf16.msra.mxu0 0
        %1524 = vmatprep.subr.bf16.mxu0 0
        %1525 = vmatpush1.bf16.msra.mxu0 0
        %1526 = vmatprep.subr.bf16.mxu0 0
        %1527 = vmatpush1.bf16.msra.mxu0 0
        %1528 = vmatprep.subr.bf16.mxu0 0
        %1529 = vmatpush1.bf16.msra.mxu0 0
        %1530 = vmatprep.subr.bf16.mxu0 %v1513
        %1531 = vmatpush1.bf16.msra.mxu0 %v1512
        %1532 = vmatprep.subr.bf16.mxu0 %v1511
        %1533 = vmatpush1.bf16.msra.mxu0 %v1510
        %1534 = vmatprep.subr.bf16.mxu0 0
        %1535 = vmatpush2.bf16.msra.mxu0 0
        %1536 = vmatprep.subr.bf16.mxu0 0
        %1537 = vmatpush2.bf16.msra.mxu0 0
        %1538 = vmatprep.subr.bf16.mxu0 0
        %1539 = vmatpush2.bf16.msra.mxu0 0
        %1540 = vmatprep.subr.bf16.mxu0 0
        %1541 = vmatpush2.bf16.msra.mxu0 0
        %1542 = vmatprep.subr.bf16.mxu0 0
        %1543 = vmatpush2.bf16.msra.mxu0 0
        %1544 = vmatprep.subr.bf16.mxu0 0
        %1545 = vmatpush2.bf16.msra.mxu0 0
        %1546 = vmatprep.subr.bf16.mxu0 0
        %1547 = vmatpush2.bf16.msra.mxu0 0
        %1548 = vmatprep.subr.bf16.mxu0 0
        %1549 = vmatpush2.bf16.msra.mxu0 0
        %1550 = vmatprep.mubr.bf16.mxu0 0
        %1551 = vmatmul.mubr.bf16.gmra.mxu0 %v492
        %v1552 = vpop.f32.mrf.mxu0
        %v1553 = vadd.f32 %v1491, %v1552
        %v1554 = vpop.f32.mrf.mxu0
        %v1555 = vadd.f32 %v1495, %v1554
        %v1556 = vpop.f32.mrf.mxu0
        %v1557 = vadd.f32 %v1491, %v1556
        %v1558 = vpop.f32.mrf.mxu0
        %v1559 = vadd.f32 %v1495, %v1558
        %1560 = vmatprep.mubr.bf16.mxu0 0
        %1561 = vmatmul.mubr.bf16.gmra.mxu0 %v495
        %v1562 = vpop.f32.mrf.mxu0
        %v1563 = vadd.f32 %v1491, %v1562
        %v1564 = vpop.f32.mrf.mxu0
        %v1565 = vadd.f32 %v1495, %v1564
        %v1566 = vpop.f32.mrf.mxu0
        %v1567 = vadd.f32 %v1491, %v1566
        %v1568 = vpop.f32.mrf.mxu0
        %v1569 = vadd.f32 %v1495, %v1568
        %1570 = vmatprep.mubr.bf16.mxu0 0
        %1571 = vmatmul.mubr.bf16.gmra.mxu0 %v498
        %v1572 = vpop.f32.mrf.mxu0
        %v1573 = vadd.f32 %v1491, %v1572
        %v1574 = vpop.f32.mrf.mxu0
        %v1575 = vadd.f32 %v1495, %v1574
        %v1576 = vpop.f32.mrf.mxu0
        %v1577 = vadd.f32 %v1491, %v1576
        %v1578 = vpop.f32.mrf.mxu0
        %v1579 = vadd.f32 %v1495, %v1578
        %1580 = vmatprep.mubr.bf16.mxu0 0
        %1581 = vmatmul.mubr.bf16.gmra.mxu0 %v501
        %v1582 = vpop.f32.mrf.mxu0
        %v1583 = vadd.f32 %v1491, %v1582
        %v1584 = vpop.f32.mrf.mxu0
        %v1585 = vadd.f32 %v1495, %v1584
        %v1586 = vpop.f32.mrf.mxu0
        %v1587 = vadd.f32 %v1491, %v1586
        %v1588 = vpop.f32.mrf.mxu0
        %v1589 = vadd.f32 %v1495, %v1588
        %1590 = vdwg.mxu0
        %v1591 = vmax.f32 %v1553, 0.0
        %v1592 = vmax.f32 %v1555, 0.0
        %v1593 = vmax.f32 %v1557, 0.0
        %v1594 = vmax.f32 %v1559, 0.0
        %v1595 = vmax.f32 %v1563, 0.0
        %v1596 = vmax.f32 %v1565, 0.0
        %v1597 = vmax.f32 %v1567, 0.0
        %v1598 = vmax.f32 %v1569, 0.0
        %v1599 = vmax.f32 %v1573, 0.0
        %v1600 = vmax.f32 %v1575, 0.0
        %v1601 = vmax.f32 %v1577, 0.0
        %v1602 = vmax.f32 %v1579, 0.0
        %v1603 = vmax.f32 %v1583, 0.0
        %v1604 = vmax.f32 %v1585, 0.0
        %v1605 = vmax.f32 %v1587, 0.0
        %v1606 = vmax.f32 %v1589, 0.0
        %v1607 = vld [vmem:[#allocation2 + $0x70] sm:$0xff]
        %v1608 = vld [vmem:[#allocation2 + $0x78] sm:$0xff]
        %v1609 = vadd.f32 %v1591, %v1593
        %v1610 = vadd.f32 %v1609, %v1595
        %v1611 = vadd.f32 %v1610, %v1597
        %v1612 = vadd.f32 %v1611, %v1599
        %v1613 = vadd.f32 %v1612, %v1601
        %v1614 = vadd.f32 %v1613, %v1603
        %v1615 = vadd.f32 %v1614, %v1605
        %v1616 = vadd.f32 %v1592, %v1594
        %v1617 = vadd.f32 %v1616, %v1596
        %v1618 = vadd.f32 %v1617, %v1598
        %v1619 = vadd.f32 %v1618, %v1600
        %v1620 = vadd.f32 %v1619, %v1602
        %v1621 = vadd.f32 %v1620, %v1604
        %v1622 = vadd.f32 %v1621, %v1606
        %v1623 = vadd.f32 %v1607, %v1615
        %v1624 = vadd.f32 %v1608, %v1622
        %1625 = vst [vmem:[#allocation2 + $0x70] sm:$0xff] %v1623
        %1626 = vst [vmem:[#allocation2 + $0x78] sm:$0xff] %v1624
        // Predicated region
        $region53: #{tpu_custom_call.1} parent=43 // pred_check
          %p1627 = pneg %p294
        $region54: #{tpu_custom_call.1} parent=43 // pred_check_branch
          %1629 = sbr.rel (%p1627) target = $region56
        $region55: #{tpu_custom_call.1} parent=43 // pred_region
          %v1630 = vld [vmem:[#allocation2] sm:$0xff]
          %v1631 = vld [vmem:[#allocation2 + $0x8] sm:$0xff]
          %v1632 = vld [vmem:[#allocation2 + $0x10] sm:$0xff]
          %v1633 = vld [vmem:[#allocation2 + $0x18] sm:$0xff]
          %v1634 = vld [vmem:[#allocation2 + $0x20] sm:$0xff]
          %v1635 = vld [vmem:[#allocation2 + $0x28] sm:$0xff]
          %v1636 = vld [vmem:[#allocation2 + $0x30] sm:$0xff]
          %v1637 = vld [vmem:[#allocation2 + $0x38] sm:$0xff]
          %v1638 = vld [vmem:[#allocation2 + $0x40] sm:$0xff]
          %v1639 = vld [vmem:[#allocation2 + $0x48] sm:$0xff]
          %v1640 = vld [vmem:[#allocation2 + $0x50] sm:$0xff]
          %v1641 = vld [vmem:[#allocation2 + $0x58] sm:$0xff]
          %v1642 = vld [vmem:[#allocation2 + $0x60] sm:$0xff]
          %v1643 = vld [vmem:[#allocation2 + $0x68] sm:$0xff]
          %v1644 = vld [vmem:[#allocation2 + $0x70] sm:$0xff]
          %v1645 = vld [vmem:[#allocation2 + $0x78] sm:$0xff]
          %v1646 = vrot.slane %v1630, 4
          %v1647 = vadd.f32 %v1630, %v1646
          %v1648 = vrot.slane %v1647, 2
          %v1649 = vadd.f32 %v1647, %v1648
          %v1650 = vrot.slane %v1649, 1
          %v1651 = vadd.f32 %v1649, %v1650
          %v1652 = vrot.slane %v1631, 4
          %v1653 = vadd.f32 %v1631, %v1652
          %v1654 = vrot.slane %v1653, 2
          %v1655 = vadd.f32 %v1653, %v1654
          %v1656 = vrot.slane %v1655, 1
          %v1657 = vadd.f32 %v1655, %v1656
          %v1658 = vrot.slane %v1632, 4
          %v1659 = vadd.f32 %v1632, %v1658
          %v1660 = vrot.slane %v1659, 2
          %v1661 = vadd.f32 %v1659, %v1660
          %v1662 = vrot.slane %v1661, 1
          %v1663 = vadd.f32 %v1661, %v1662
          %v1664 = vrot.slane %v1633, 4
          %v1665 = vadd.f32 %v1633, %v1664
          %v1666 = vrot.slane %v1665, 2
          %v1667 = vadd.f32 %v1665, %v1666
          %v1668 = vrot.slane %v1667, 1
          %v1669 = vadd.f32 %v1667, %v1668
          %v1670 = vrot.slane %v1634, 4
          %v1671 = vadd.f32 %v1634, %v1670
          %v1672 = vrot.slane %v1671, 2
          %v1673 = vadd.f32 %v1671, %v1672
          %v1674 = vrot.slane %v1673, 1
          %v1675 = vadd.f32 %v1673, %v1674
          %v1676 = vrot.slane %v1635, 4
          %v1677 = vadd.f32 %v1635, %v1676
          %v1678 = vrot.slane %v1677, 2
          %v1679 = vadd.f32 %v1677, %v1678
          %v1680 = vrot.slane %v1679, 1
          %v1681 = vadd.f32 %v1679, %v1680
          %v1682 = vrot.slane %v1636, 4
          %v1683 = vadd.f32 %v1636, %v1682
          %v1684 = vrot.slane %v1683, 2
          %v1685 = vadd.f32 %v1683, %v1684
          %v1686 = vrot.slane %v1685, 1
          %v1687 = vadd.f32 %v1685, %v1686
          %v1688 = vrot.slane %v1637, 4
          %v1689 = vadd.f32 %v1637, %v1688
          %v1690 = vrot.slane %v1689, 2
          %v1691 = vadd.f32 %v1689, %v1690
          %v1692 = vrot.slane %v1691, 1
          %v1693 = vadd.f32 %v1691, %v1692
          %v1694 = vrot.slane %v1638, 4
          %v1695 = vadd.f32 %v1638, %v1694
          %v1696 = vrot.slane %v1695, 2
          %v1697 = vadd.f32 %v1695, %v1696
          %v1698 = vrot.slane %v1697, 1
          %v1699 = vadd.f32 %v1697, %v1698
          %v1700 = vrot.slane %v1639, 4
          %v1701 = vadd.f32 %v1639, %v1700
          %v1702 = vrot.slane %v1701, 2
          %v1703 = vadd.f32 %v1701, %v1702
          %v1704 = vrot.slane %v1703, 1
          %v1705 = vadd.f32 %v1703, %v1704
          %v1706 = vrot.slane %v1640, 4
          %v1707 = vadd.f32 %v1640, %v1706
          %v1708 = vrot.slane %v1707, 2
          %v1709 = vadd.f32 %v1707, %v1708
          %v1710 = vrot.slane %v1709, 1
          %v1711 = vadd.f32 %v1709, %v1710
          %v1712 = vrot.slane %v1641, 4
          %v1713 = vadd.f32 %v1641, %v1712
          %v1714 = vrot.slane %v1713, 2
          %v1715 = vadd.f32 %v1713, %v1714
          %v1716 = vrot.slane %v1715, 1
          %v1717 = vadd.f32 %v1715, %v1716
          %v1718 = vrot.slane %v1642, 4
          %v1719 = vadd.f32 %v1642, %v1718
          %v1720 = vrot.slane %v1719, 2
          %v1721 = vadd.f32 %v1719, %v1720
          %v1722 = vrot.slane %v1721, 1
          %v1723 = vadd.f32 %v1721, %v1722
          %v1724 = vrot.slane %v1643, 4
          %v1725 = vadd.f32 %v1643, %v1724
          %v1726 = vrot.slane %v1725, 2
          %v1727 = vadd.f32 %v1725, %v1726
          %v1728 = vrot.slane %v1727, 1
          %v1729 = vadd.f32 %v1727, %v1728
          %v1730 = vrot.slane %v1644, 4
          %v1731 = vadd.f32 %v1644, %v1730
          %v1732 = vrot.slane %v1731, 2
          %v1733 = vadd.f32 %v1731, %v1732
          %v1734 = vrot.slane %v1733, 1
          %v1735 = vadd.f32 %v1733, %v1734
          %v1736 = vrot.slane %v1645, 4
          %v1737 = vadd.f32 %v1645, %v1736
          %v1738 = vrot.slane %v1737, 2
          %v1739 = vadd.f32 %v1737, %v1738
          %v1740 = vrot.slane %v1739, 1
          %v1741 = vadd.f32 %v1739, %v1740
          %v1742 = vld [vmem:[%s5] sm:$0xff]
          %v1743 = vld [vmem:[%s5 + $0x8] sm:$0xff]
          %v1746 = vlaneseq
          %v1747 = vshrl.u32 %v1746, 7
          %v1748 = vsub.s32 0, %v1747
          %v1749 = vrot.slane %v1742, %v1748
          %v1750 = vlaneseq
          %v1751 = vshrl.u32 %v1750, 7
          %v1752 = vsub.s32 1, %v1751
          %v1753 = vrot.slane %v1742, %v1752
          %v1754 = vlaneseq
          %v1755 = vshrl.u32 %v1754, 7
          %v1756 = vsub.s32 2, %v1755
          %v1757 = vrot.slane %v1742, %v1756
          %v1758 = vlaneseq
          %v1759 = vshrl.u32 %v1758, 7
          %v1760 = vsub.s32 3, %v1759
          %v1761 = vrot.slane %v1742, %v1760
          %v1762 = vlaneseq
          %v1763 = vshrl.u32 %v1762, 7
          %v1764 = vsub.s32 4, %v1763
          %v1765 = vrot.slane %v1742, %v1764
          %v1766 = vlaneseq
          %v1767 = vshrl.u32 %v1766, 7
          %v1768 = vsub.s32 5, %v1767
          %v1769 = vrot.slane %v1742, %v1768
          %v1770 = vlaneseq
          %v1771 = vshrl.u32 %v1770, 7
          %v1772 = vsub.s32 6, %v1771
          %v1773 = vrot.slane %v1742, %v1772
          %v1774 = vlaneseq
          %v1775 = vshrl.u32 %v1774, 7
          %v1776 = vsub.s32 7, %v1775
          %v1777 = vrot.slane %v1742, %v1776
          %v1778 = vlaneseq
          %v1779 = vshrl.u32 %v1778, 7
          %v1780 = vsub.s32 0, %v1779
          %v1781 = vrot.slane %v1743, %v1780
          %v1782 = vlaneseq
          %v1783 = vshrl.u32 %v1782, 7
          %v1784 = vsub.s32 1, %v1783
          %v1785 = vrot.slane %v1743, %v1784
          %v1786 = vlaneseq
          %v1787 = vshrl.u32 %v1786, 7
          %v1788 = vsub.s32 2, %v1787
          %v1789 = vrot.slane %v1743, %v1788
          %v1790 = vlaneseq
          %v1791 = vshrl.u32 %v1790, 7
          %v1792 = vsub.s32 3, %v1791
          %v1793 = vrot.slane %v1743, %v1792
          %v1794 = vlaneseq
          %v1795 = vshrl.u32 %v1794, 7
          %v1796 = vsub.s32 4, %v1795
          %v1797 = vrot.slane %v1743, %v1796
          %v1798 = vlaneseq
          %v1799 = vshrl.u32 %v1798, 7
          %v1800 = vsub.s32 5, %v1799
          %v1801 = vrot.slane %v1743, %v1800
          %v1802 = vlaneseq
          %v1803 = vshrl.u32 %v1802, 7
          %v1804 = vsub.s32 6, %v1803
          %v1805 = vrot.slane %v1743, %v1804
          %v1806 = vlaneseq
          %v1807 = vshrl.u32 %v1806, 7
          %v1808 = vsub.s32 7, %v1807
          %v1809 = vrot.slane %v1743, %v1808
          %v1826 = vsub.f32 %v1651, %v1749
          %v1827 = vsub.f32 %v1657, %v1753
          %v1828 = vsub.f32 %v1663, %v1757
          %v1829 = vsub.f32 %v1669, %v1761
          %v1830 = vsub.f32 %v1675, %v1765
          %v1831 = vsub.f32 %v1681, %v1769
          %v1832 = vsub.f32 %v1687, %v1773
          %v1833 = vsub.f32 %v1693, %v1777
          %v1834 = vsub.f32 %v1699, %v1781
          %v1835 = vsub.f32 %v1705, %v1785
          %v1836 = vsub.f32 %v1711, %v1789
          %v1837 = vsub.f32 %v1717, %v1793
          %v1838 = vsub.f32 %v1723, %v1797
          %v1839 = vsub.f32 %v1729, %v1801
          %v1840 = vsub.f32 %v1735, %v1805
          %v1841 = vsub.f32 %v1741, %v1809
          %v1842 = vmul.f32 %v1826, 0.020408163
          %v1843 = vmul.f32 %v1827, 0.020408163
          %v1844 = vmul.f32 %v1828, 0.020408163
          %v1845 = vmul.f32 %v1829, 0.020408163
          %v1846 = vmul.f32 %v1830, 0.020408163
          %v1847 = vmul.f32 %v1831, 0.020408163
          %v1848 = vmul.f32 %v1832, 0.020408163
          %v1849 = vmul.f32 %v1833, 0.020408163
          %v1850 = vmul.f32 %v1834, 0.020408163
          %v1851 = vmul.f32 %v1835, 0.020408163
          %v1852 = vmul.f32 %v1836, 0.020408163
          %v1853 = vmul.f32 %v1837, 0.020408163
          %v1854 = vmul.f32 %v1838, 0.020408163
          %v1855 = vmul.f32 %v1839, 0.020408163
          %v1856 = vmul.f32 %v1840, 0.020408163
          %v1857 = vmul.f32 %v1841, 0.020408163
          %v1874 = vcombine.low %v1842, %v1843
          %v1875 = vcombine.low %v1844, %v1845
          %v1876 = vcombine.low %v1846, %v1847
          %v1877 = vcombine.low %v1848, %v1849
          %v1879 = vunpack.c.l.s4 1966171168
          %v1880 = vunpack.c.0.s8 %v1879
          %v1881 = vlaneseq
          %v1882 = vshrl.u32 %v1881, 7
          %v1883 = vsub.s32 %v1880, %v1882
          %v1884 = vrot.slane %v1874, %v1883
          %v1886 = vunpack.c.l.s4 1966171168
          %v1887 = vunpack.c.0.s8 %v1886
          %v1888 = vlaneseq
          %v1889 = vshrl.u32 %v1888, 7
          %v1890 = vsub.s32 %v1887, %v1889
          %v1891 = vrot.slane %v1875, %v1890
          %v1893 = vunpack.c.l.s4 1966171168
          %v1894 = vunpack.c.0.s8 %v1893
          %v1895 = vlaneseq
          %v1896 = vshrl.u32 %v1895, 7
          %v1897 = vsub.s32 %v1894, %v1896
          %v1898 = vrot.slane %v1876, %v1897
          %v1900 = vunpack.c.l.s4 1966171168
          %v1901 = vunpack.c.0.s8 %v1900
          %v1902 = vlaneseq
          %v1903 = vshrl.u32 %v1902, 7
          %v1904 = vsub.s32 %v1901, %v1903
          %v1905 = vrot.slane %v1877, %v1904
          %v1906 = vcombine.low %v1884, %v1891
          %v1907 = vcombine.low %v1898, %v1905
          %v1909 = vunpack.c.l.s4 1966171168
          %v1910 = vunpack.c.0.s8 %v1909
          %v1911 = vlaneseq
          %v1912 = vshrl.u32 %v1911, 7
          %v1913 = vsub.s32 %v1910, %v1912
          %v1914 = vrot.slane %v1906, %v1913
          %v1916 = vunpack.c.l.s4 1966171168
          %v1917 = vunpack.c.0.s8 %v1916
          %v1918 = vlaneseq
          %v1919 = vshrl.u32 %v1918, 7
          %v1920 = vsub.s32 %v1917, %v1919
          %v1921 = vrot.slane %v1907, %v1920
          %v1922 = vcombine.low %v1914, %v1921
          %v1923 = vcombine.low %v1850, %v1851
          %v1924 = vcombine.low %v1852, %v1853
          %v1925 = vcombine.low %v1854, %v1855
          %v1926 = vcombine.low %v1856, %v1857
          %v1928 = vunpack.c.l.s4 1966171168
          %v1929 = vunpack.c.0.s8 %v1928
          %v1930 = vlaneseq
          %v1931 = vshrl.u32 %v1930, 7
          %v1932 = vsub.s32 %v1929, %v1931
          %v1933 = vrot.slane %v1923, %v1932
          %v1935 = vunpack.c.l.s4 1966171168
          %v1936 = vunpack.c.0.s8 %v1935
          %v1937 = vlaneseq
          %v1938 = vshrl.u32 %v1937, 7
          %v1939 = vsub.s32 %v1936, %v1938
          %v1940 = vrot.slane %v1924, %v1939
          %v1942 = vunpack.c.l.s4 1966171168
          %v1943 = vunpack.c.0.s8 %v1942
          %v1944 = vlaneseq
          %v1945 = vshrl.u32 %v1944, 7
          %v1946 = vsub.s32 %v1943, %v1945
          %v1947 = vrot.slane %v1925, %v1946
          %v1949 = vunpack.c.l.s4 1966171168
          %v1950 = vunpack.c.0.s8 %v1949
          %v1951 = vlaneseq
          %v1952 = vshrl.u32 %v1951, 7
          %v1953 = vsub.s32 %v1950, %v1952
          %v1954 = vrot.slane %v1926, %v1953
          %v1955 = vcombine.low %v1933, %v1940
          %v1956 = vcombine.low %v1947, %v1954
          %v1958 = vunpack.c.l.s4 1966171168
          %v1959 = vunpack.c.0.s8 %v1958
          %v1960 = vlaneseq
          %v1961 = vshrl.u32 %v1960, 7
          %v1962 = vsub.s32 %v1959, %v1961
          %v1963 = vrot.slane %v1955, %v1962
          %v1965 = vunpack.c.l.s4 1966171168
          %v1966 = vunpack.c.0.s8 %v1965
          %v1967 = vlaneseq
          %v1968 = vshrl.u32 %v1967, 7
          %v1969 = vsub.s32 %v1966, %v1968
          %v1970 = vrot.slane %v1956, %v1969
          %v1971 = vcombine.low %v1963, %v1970
          %1974 = vst [vmem:[%s282] sm:$0xff] %v1922
          %1975 = vst [vmem:[%s282 + $0x8] sm:$0xff] %v1971
        $region56: #{tpu_custom_call.1} parent=43 // pred_fallthru
          _
        %s1976 = sand.u32 %s174, 1
        %s1977 = scalar_lea.sflag [#allocation5], %s1976
        %s1978 = sand.u32 %s174, 1
        %s1979 = smul.addr %s1978, 16
        %s1980 = scalar_lea.vmem [#allocation6], %s1979
        // Predicated region
        $region57: #{tpu_custom_call.1} parent=43 // pred_check
          %p1981 = pneg %p184
        $region58: #{tpu_custom_call.1} parent=43 // pred_check_branch
          %1983 = sbr.rel (%p1981) target = $region60
        $region59: #{tpu_custom_call.1} parent=43 // pred_region
          %s1985 = ssub.s32 256, 256
          %1986 = vsyncadd %s1977, %s1985
          %s1987 = smul.addr %s25, 16
          %s1988 = smul.addr %s1987, 16
          %s1989 = scalar_lea.hbm %s6, %s1988
          %s1991 = sshll.u32 %s1980, 4
          %s1992 = int_to_ptr.vmem [resolvable:$true] %s1991
          %1994 = dma.vmem_to_hbm [thread:$0]  %s1992, 256, %s1989, %s1977
        $region60: #{tpu_custom_call.1} parent=43 // pred_fallthru
          _
      $region44: #{tpu_custom_call.1} parent=5 // pred_fallthru
        _
      %p1995 = scmp.le.s32.totalorder 2, %s16
      // Predicated region
      $region61: #{tpu_custom_call.1} parent=5 // pred_check
        %p1996 = pneg %p1995
      $region62: #{tpu_custom_call.1} parent=5 // pred_check_branch
        %1998 = sbr.rel (%p1996) target = $region64
      $region63: #{tpu_custom_call.1} parent=5 // pred_region
        %s1999 = ssub.s32 %s16, 2
        // Predicated region
        $region65: #{tpu_custom_call.1} parent=63 // pred_check
          %p2000 = pneg %p190
        $region66: #{tpu_custom_call.1} parent=63 // pred_check_branch
          %2002 = sbr.rel (%p2000) target = $region68
        $region67: #{tpu_custom_call.1} parent=63 // pred_region
          %s2003 = sand.u32 %s175, 1
          %s2004 = scalar_lea.sflag [#allocation5], %s2003
          %s2005 = sand.u32 %s175, 1
          %s2006 = smul.addr %s2005, 16
          %s2007 = scalar_lea.vmem [#allocation6], %s2006
          %2008 = dma.done %s2004, 256
        $region68: #{tpu_custom_call.1} parent=63 // pred_fallthru
          _
      $region64: #{tpu_custom_call.1} parent=5 // pred_fallthru
        _
    $region6: #{tpu_custom_call.1} parent=1 // loop_footer
      %s20 = sadd.s32 1, %s16
    $region7: #{tpu_custom_call.1} parent=1 // loop_footer_branch
      %15 = sbr.rel target = $region3
    $region8: #{tpu_custom_call.1} parent=1 // loop_exit
      _
    %2009 = vsyncpa [#allocation4], 1
    %s2010 = scalar_lea.sflag [#allocation4], 1
    %2011 = vsyncpa %s2010, 1
    %2012 = vsyncpa [#allocation5], 1
    %s2013 = scalar_lea.sflag [#allocation5], 1
    %2014 = vsyncpa %s2013, 1

</llo_original>
